<compile_context>
chip_gen: v7x
topology: tpu7x:2x2x1
jax: 0.10.0
libtpu: 0.0.40
codegen_flags: <defaults>
</compile_context>

<pallas_src>
import functools

import jax
import jax.numpy as jnp
from jax.experimental import pallas as pl
from jax.experimental.pallas import tpu as pltpu

EPS = 1e-5


def _residual_kernel(x_ref, mask_ref, w1_ref, b1_ref, g1_ref, be1_ref,
                     w2_ref, b2_ref, g2_ref, be2_ref, out_ref, im_ref, *, W):
    M = x_ref.shape[1]
    taps = [(dy, dx) for dy in (-1, 0, 1) for dx in (-1, 0, 1)]

    def conv3x3(x, w_ref, b_ref):
        # Build the im2col operand (9*C, M) in VMEM scratch: each tap is a
        # lane-shifted copy of x with the conv's zero padding applied via the
        # precomputed validity mask.  Only the |off| out-of-range border lanes
        # per tap are zero-filled explicitly (no full-buffer zero fill).
        c = x.shape[0]
        for t, (dy, dx) in enumerate(taps):
            off = dy * W + dx                  # flat-index shift for this tap
            s0, d0 = max(0, off), max(0, -off)
            length = M - abs(off)
            r0 = t * c
            if off > 0:
                im_ref[r0:r0 + c, length:M] = jnp.zeros((c, off), jnp.float32)
            elif off < 0:
                im_ref[r0:r0 + c, 0:d0] = jnp.zeros((c, d0), jnp.float32)
            im_ref[r0:r0 + c, d0:d0 + length] = (
                x[:, s0:s0 + length] * mask_ref[t:t + 1, d0:d0 + length])
        # Single MXU contraction per conv: (Cout, 9*C) @ (9*C, M) -> (Cout, M).
        return jnp.dot(w_ref[...], im_ref[...],
                       preferred_element_type=jnp.float32) + b_ref[...]

    def batchnorm(y, g_ref, be_ref):
        # Training-mode batch stats over M = N*H*W, single pass (E[x], E[x^2]).
        inv_m = 1.0 / M
        mean = jnp.sum(y, axis=1, keepdims=True) * inv_m
        var = jnp.sum(y * y, axis=1, keepdims=True) * inv_m - mean * mean
        return (y - mean) * jax.lax.rsqrt(var + EPS) * g_ref[...] + be_ref[...]

    x = x_ref[...]                                                # (Cin, M)
    y = jnp.maximum(batchnorm(conv3x3(x, w1_ref, b1_ref), g1_ref, be1_ref), 0.0)
    y = batchnorm(conv3x3(y, w2_ref, b2_ref), g2_ref, be2_ref)
    out_ref[...] = jnp.maximum(y + x, 0.0)                        # identity shortcut + relu


@jax.jit
def residual_forward(x_nchw, w1, b1, g1, be1, w2, b2, g2, be2):
    """x_nchw: (N, Cin, H, W) f32; w1/w2 in HWIO. Returns (N, Cout, H, W) f32."""
    N, Cin, H, W = x_nchw.shape
    Cout = w1.shape[-1]
    M = N * H * W

    # Lane-dense channel-major layout (pure layout plumbing in the wrapper).
    x_cm = jnp.transpose(x_nchw, (1, 0, 2, 3)).reshape(Cin, M)

    # Conv weights pre-flattened for one im2col dot per conv: (Cout, 9*Cin).
    w1_mat = w1.reshape(9 * Cin, Cout).T
    w2_mat = w2.reshape(9 * Cout, Cout).T

    # Per-channel parameters as (C, 1) columns (lane-broadcast in-kernel).
    col = lambda v: v.reshape(-1, 1)

    # Per-tap validity masks encoding the 3x3 conv's zero padding, (9, M) f32.
    m = jnp.arange(M, dtype=jnp.int32)
    h_idx = (m // W) % H
    w_idx = m % W
    masks = jnp.stack(
        [((h_idx + dy >= 0) & (h_idx + dy < H) &
          (w_idx + dx >= 0) & (w_idx + dx < W))
         for dy in (-1, 0, 1) for dx in (-1, 0, 1)]).astype(jnp.float32)

    full = lambda shape: pl.BlockSpec(shape, lambda i: (0,) * len(shape))

    out_cm = pl.pallas_call(
        functools.partial(_residual_kernel, W=W),
        out_shape=jax.ShapeDtypeStruct((Cout, M), jnp.float32),
        grid=(1,),
        in_specs=[
            full((Cin, M)),            # x, channel-major flat
            full((9, M)),              # conv padding masks
            full((Cout, 9 * Cin)),     # conv1 weight (im2col layout)
            full((Cout, 1)),           # conv1 bias
            full((Cout, 1)),           # bn1 gamma
            full((Cout, 1)),           # bn1 beta
            full((Cout, 9 * Cout)),    # conv2 weight (im2col layout)
            full((Cout, 1)),           # conv2 bias
            full((Cout, 1)),           # bn2 gamma
            full((Cout, 1)),           # bn2 beta
        ],
        out_specs=full((Cout, M)),     # lane-dense output slab (M multiple of 128)
        scratch_shapes=[pltpu.VMEM((9 * Cout, M), jnp.float32)],  # im2col buffer
        compiler_params=pltpu.CompilerParams(
            dimension_semantics=("arbitrary",)),
    )(x_cm, masks, w1_mat, col(b1), col(g1), col(be1),
      w2_mat, col(b2), col(g2), col(be2))

    return jnp.transpose(out_cm.reshape(Cout, N, H, W), (1, 0, 2, 3))


def _ref_forward(x_nchw, w1, b1, g1, be1, w2, b2, g2, be2):
    """Pure-JAX reference (NHWC internally) mirroring the PyTorch forward."""
    x = jnp.transpose(x_nchw, (0, 2, 3, 1))

    def conv3x3(x, w, b):
        y = jax.lax.conv_general_dilated(
            x, w, window_strides=(1, 1), padding=((1, 1), (1, 1)),
            dimension_numbers=("NHWC", "HWIO", "NHWC"))
        return y + b.reshape(1, 1, 1, -1)

    def bn(x, g, be):
        mean = jnp.mean(x, axis=(0, 1, 2), keepdims=True)
        var = jnp.mean((x - mean) ** 2, axis=(0, 1, 2), keepdims=True)
        return (x - mean) * jax.lax.rsqrt(var + EPS) * g.reshape(1, 1, 1, -1) \
            + be.reshape(1, 1, 1, -1)

    y = jax.nn.relu(bn(conv3x3(x, w1, b1), g1, be1))
    y = bn(conv3x3(y, w2, b2), g2, be2)
    y = jax.nn.relu(y + x)
    return jnp.transpose(y, (0, 3, 1, 2))


if __name__ == "__main__":
    N, Cin, H, W = 2, 4, 16, 16
    Cout = Cin  # identity shortcut requires input_channels == num_channels

    key = jax.random.PRNGKey(0)
    k1, k2, k3, k4, kx = jax.random.split(key, 5)

    # conv weights in HWIO, deterministic synthetic init
    w1 = 0.1 * jax.random.normal(k1, (3, 3, Cin, Cout), jnp.float32)
    b1 = 0.1 * jax.random.normal(k2, (Cout,), jnp.float32)
    w2 = 0.1 * jax.random.normal(k3, (3, 3, Cout, Cout), jnp.float32)
    b2 = 0.1 * jax.random.normal(k4, (Cout,), jnp.float32)
    # BatchNorm2d default init: gamma=1, beta=0
    g1 = jnp.ones((Cout,), jnp.float32)
    be1 = jnp.zeros((Cout,), jnp.float32)
    g2 = jnp.ones((Cout,), jnp.float32)
    be2 = jnp.zeros((Cout,), jnp.float32)

    x = jax.random.normal(kx, (N, Cin, H, W), jnp.float32)

    out = residual_forward(x, w1, b1, g1, be1, w2, b2, g2, be2)
    out = jax.block_until_ready(out)

    ref = _ref_forward(x, w1, b1, g1, be1, w2, b2, g2, be2)
    assert out.shape == (N, Cout, H, W)
    assert jnp.allclose(out, ref, rtol=2e-4, atol=2e-4), \
        f"max abs err = {jnp.max(jnp.abs(out - ref))}"

    print("KERNEL_OK")
</pallas_src>

<mosaic_0001>
module attributes {stable_mosaic.version = 11 : i64} {
  func.func @_residual_kernel(%arg0: i32, %arg1: memref<4x512xf32, #tpu.memory_space<vmem>>, %arg2: memref<9x512xf32, #tpu.memory_space<vmem>>, %arg3: memref<4x36xf32, #tpu.memory_space<vmem>>, %arg4: memref<4x1xf32, #tpu.memory_space<vmem>>, %arg5: memref<4x1xf32, #tpu.memory_space<vmem>>, %arg6: memref<4x1xf32, #tpu.memory_space<vmem>>, %arg7: memref<4x36xf32, #tpu.memory_space<vmem>>, %arg8: memref<4x1xf32, #tpu.memory_space<vmem>>, %arg9: memref<4x1xf32, #tpu.memory_space<vmem>>, %arg10: memref<4x1xf32, #tpu.memory_space<vmem>>, %arg11: memref<4x512xf32, #tpu.memory_space<vmem>>, %arg12: memref<36x512xf32, #tpu.memory_space<vmem>>) attributes {dimension_semantics = [#tpu.dimension_semantics<arbitrary>], iteration_bounds = array<i64: 1>, scalar_prefetch = 0 : i64, scratch_operands = 1 : i64, tpu.core_type = #tpu.core_type<tc>, window_params = [{pipeline_mode = #tpu.pipeline_mode<synchronous>, transform_indices = @transform_0, window_bounds = array<i64: 4, 512>}, {pipeline_mode = #tpu.pipeline_mode<synchronous>, transform_indices = @transform_1, window_bounds = array<i64: 9, 512>}, {pipeline_mode = #tpu.pipeline_mode<synchronous>, transform_indices = @transform_2, window_bounds = array<i64: 4, 36>}, {pipeline_mode = #tpu.pipeline_mode<synchronous>, transform_indices = @transform_3, window_bounds = array<i64: 4, 1>}, {pipeline_mode = #tpu.pipeline_mode<synchronous>, transform_indices = @transform_4, window_bounds = array<i64: 4, 1>}, {pipeline_mode = #tpu.pipeline_mode<synchronous>, transform_indices = @transform_5, window_bounds = array<i64: 4, 1>}, {pipeline_mode = #tpu.pipeline_mode<synchronous>, transform_indices = @transform_6, window_bounds = array<i64: 4, 36>}, {pipeline_mode = #tpu.pipeline_mode<synchronous>, transform_indices = @transform_7, window_bounds = array<i64: 4, 1>}, {pipeline_mode = #tpu.pipeline_mode<synchronous>, transform_indices = @transform_8, window_bounds = array<i64: 4, 1>}, {pipeline_mode = #tpu.pipeline_mode<synchronous>, transform_indices = @transform_9, window_bounds = array<i64: 4, 1>}, {pipeline_mode = #tpu.pipeline_mode<synchronous>, transform_indices = @transform_10, window_bounds = array<i64: 4, 512>}]} {
    %c0 = arith.constant 0 : index
    %c0_0 = arith.constant 0 : index
    %0 = vector.load %arg1[%c0, %c0_0] : memref<4x512xf32, #tpu.memory_space<vmem>>, vector<4x512xf32>
    %cst = arith.constant 0.000000e+00 : f32
    %1 = vector.broadcast %cst : f32 to vector<4x17xf32>
    %c0_1 = arith.constant 0 : index
    %c0_2 = arith.constant 0 : index
    %2 = vector.load %arg12[%c0_1, %c0_2] : memref<36x512xf32, #tpu.memory_space<vmem>>, vector<4x17xf32>
    tpu.vector_store %arg12[%c0_1, %c0_2], %1 {strides = array<i32>} : memref<36x512xf32, #tpu.memory_space<vmem>>, vector<4x17xf32>,
    %3 = vector.extract_strided_slice %0 {offsets = [0, 0], sizes = [4, 495], strides = [1, 1]} : vector<4x512xf32> to vector<4x495xf32>
    %c0_3 = arith.constant 0 : index
    %c17 = arith.constant 17 : index
    %4 = vector.load %arg2[%c0_3, %c17] : memref<9x512xf32, #tpu.memory_space<vmem>>, vector<1x495xf32>
    %5 = vector.broadcast %4 : vector<1x495xf32> to vector<4x495xf32>
    %6 = arith.mulf %3, %5 : vector<4x495xf32>
    %c0_4 = arith.constant 0 : index
    %c17_5 = arith.constant 17 : index
    %7 = vector.load %arg12[%c0_4, %c17_5] : memref<36x512xf32, #tpu.memory_space<vmem>>, vector<4x495xf32>
    tpu.vector_store %arg12[%c0_4, %c17_5], %6 {strides = array<i32>} : memref<36x512xf32, #tpu.memory_space<vmem>>, vector<4x495xf32>,
    %cst_6 = arith.constant 0.000000e+00 : f32
    %8 = vector.broadcast %cst_6 : f32 to vector<4x16xf32>
    %c4 = arith.constant 4 : index
    %c0_7 = arith.constant 0 : index
    %9 = vector.load %arg12[%c4, %c0_7] : memref<36x512xf32, #tpu.memory_space<vmem>>, vector<4x16xf32>
    tpu.vector_store %arg12[%c4, %c0_7], %8 {strides = array<i32>} : memref<36x512xf32, #tpu.memory_space<vmem>>, vector<4x16xf32>,
    %10 = vector.extract_strided_slice %0 {offsets = [0, 0], sizes = [4, 496], strides = [1, 1]} : vector<4x512xf32> to vector<4x496xf32>
    %c1 = arith.constant 1 : index
    %c16 = arith.constant 16 : index
    %11 = vector.load %arg2[%c1, %c16] : memref<9x512xf32, #tpu.memory_space<vmem>>, vector<1x496xf32>
    %12 = vector.broadcast %11 : vector<1x496xf32> to vector<4x496xf32>
    %13 = arith.mulf %10, %12 : vector<4x496xf32>
    %c4_8 = arith.constant 4 : index
    %c16_9 = arith.constant 16 : index
    %14 = vector.load %arg12[%c4_8, %c16_9] : memref<36x512xf32, #tpu.memory_space<vmem>>, vector<4x496xf32>
    tpu.vector_store %arg12[%c4_8, %c16_9], %13 {strides = array<i32>} : memref<36x512xf32, #tpu.memory_space<vmem>>, vector<4x496xf32>,
    %cst_10 = arith.constant 0.000000e+00 : f32
    %15 = vector.broadcast %cst_10 : f32 to vector<4x15xf32>
    %c8 = arith.constant 8 : index
    %c0_11 = arith.constant 0 : index
    %16 = vector.load %arg12[%c8, %c0_11] : memref<36x512xf32, #tpu.memory_space<vmem>>, vector<4x15xf32>
    tpu.vector_store %arg12[%c8, %c0_11], %15 {strides = array<i32>} : memref<36x512xf32, #tpu.memory_space<vmem>>, vector<4x15xf32>,
    %17 = vector.extract_strided_slice %0 {offsets = [0, 0], sizes = [4, 497], strides = [1, 1]} : vector<4x512xf32> to vector<4x497xf32>
    %c2 = arith.constant 2 : index
    %c15 = arith.constant 15 : index
    %18 = vector.load %arg2[%c2, %c15] : memref<9x512xf32, #tpu.memory_space<vmem>>, vector<1x497xf32>
    %19 = vector.broadcast %18 : vector<1x497xf32> to vector<4x497xf32>
    %20 = arith.mulf %17, %19 : vector<4x497xf32>
    %c8_12 = arith.constant 8 : index
    %c15_13 = arith.constant 15 : index
    %21 = vector.load %arg12[%c8_12, %c15_13] : memref<36x512xf32, #tpu.memory_space<vmem>>, vector<4x497xf32>
    tpu.vector_store %arg12[%c8_12, %c15_13], %20 {strides = array<i32>} : memref<36x512xf32, #tpu.memory_space<vmem>>, vector<4x497xf32>,
    %cst_14 = arith.constant 0.000000e+00 : f32
    %22 = vector.broadcast %cst_14 : f32 to vector<4x1xf32>
    %c12 = arith.constant 12 : index
    %c0_15 = arith.constant 0 : index
    %23 = vector.load %arg12[%c12, %c0_15] : memref<36x512xf32, #tpu.memory_space<vmem>>, vector<4x1xf32>
    tpu.vector_store %arg12[%c12, %c0_15], %22 {strides = array<i32>} : memref<36x512xf32, #tpu.memory_space<vmem>>, vector<4x1xf32>,
    %24 = vector.extract_strided_slice %0 {offsets = [0, 0], sizes = [4, 511], strides = [1, 1]} : vector<4x512xf32> to vector<4x511xf32>
    %c3 = arith.constant 3 : index
    %c1_16 = arith.constant 1 : index
    %25 = vector.load %arg2[%c3, %c1_16] : memref<9x512xf32, #tpu.memory_space<vmem>>, vector<1x511xf32>
    %26 = vector.broadcast %25 : vector<1x511xf32> to vector<4x511xf32>
    %27 = arith.mulf %24, %26 : vector<4x511xf32>
    %c12_17 = arith.constant 12 : index
    %c1_18 = arith.constant 1 : index
    %28 = vector.load %arg12[%c12_17, %c1_18] : memref<36x512xf32, #tpu.memory_space<vmem>>, vector<4x511xf32>
    tpu.vector_store %arg12[%c12_17, %c1_18], %27 {strides = array<i32>} : memref<36x512xf32, #tpu.memory_space<vmem>>, vector<4x511xf32>,
    %c4_19 = arith.constant 4 : index
    %c0_20 = arith.constant 0 : index
    %29 = vector.load %arg2[%c4_19, %c0_20] : memref<9x512xf32, #tpu.memory_space<vmem>>, vector<1x512xf32>
    %30 = vector.broadcast %29 : vector<1x512xf32> to vector<4x512xf32>
    %31 = arith.mulf %0, %30 : vector<4x512xf32>
    %c16_21 = arith.constant 16 : index
    %c0_22 = arith.constant 0 : index
    %32 = vector.load %arg12[%c16_21, %c0_22] : memref<36x512xf32, #tpu.memory_space<vmem>>, vector<4x512xf32>
    tpu.vector_store %arg12[%c16_21, %c0_22], %31 {strides = array<i32>} : memref<36x512xf32, #tpu.memory_space<vmem>>, vector<4x512xf32>,
    %cst_23 = arith.constant 0.000000e+00 : f32
    %33 = vector.broadcast %cst_23 : f32 to vector<4x1xf32>
    %c20 = arith.constant 20 : index
    %c511 = arith.constant 511 : index
    %34 = vector.load %arg12[%c20, %c511] : memref<36x512xf32, #tpu.memory_space<vmem>>, vector<4x1xf32>
    tpu.vector_store %arg12[%c20, %c511], %33 {strides = array<i32>} : memref<36x512xf32, #tpu.memory_space<vmem>>, vector<4x1xf32>,
    %35 = vector.extract_strided_slice %0 {offsets = [0, 1], sizes = [4, 511], strides = [1, 1]} : vector<4x512xf32> to vector<4x511xf32>
    %c5 = arith.constant 5 : index
    %c0_24 = arith.constant 0 : index
    %36 = vector.load %arg2[%c5, %c0_24] : memref<9x512xf32, #tpu.memory_space<vmem>>, vector<1x511xf32>
    %37 = vector.broadcast %36 : vector<1x511xf32> to vector<4x511xf32>
    %38 = arith.mulf %35, %37 : vector<4x511xf32>
    %c20_25 = arith.constant 20 : index
    %c0_26 = arith.constant 0 : index
    %39 = vector.load %arg12[%c20_25, %c0_26] : memref<36x512xf32, #tpu.memory_space<vmem>>, vector<4x511xf32>
    tpu.vector_store %arg12[%c20_25, %c0_26], %38 {strides = array<i32>} : memref<36x512xf32, #tpu.memory_space<vmem>>, vector<4x511xf32>,
    %cst_27 = arith.constant 0.000000e+00 : f32
    %40 = vector.broadcast %cst_27 : f32 to vector<4x15xf32>
    %c24 = arith.constant 24 : index
    %c497 = arith.constant 497 : index
    %41 = vector.load %arg12[%c24, %c497] : memref<36x512xf32, #tpu.memory_space<vmem>>, vector<4x15xf32>
    tpu.vector_store %arg12[%c24, %c497], %40 {strides = array<i32>} : memref<36x512xf32, #tpu.memory_space<vmem>>, vector<4x15xf32>,
    %42 = vector.extract_strided_slice %0 {offsets = [0, 15], sizes = [4, 497], strides = [1, 1]} : vector<4x512xf32> to vector<4x497xf32>
    %c6 = arith.constant 6 : index
    %c0_28 = arith.constant 0 : index
    %43 = vector.load %arg2[%c6, %c0_28] : memref<9x512xf32, #tpu.memory_space<vmem>>, vector<1x497xf32>
    %44 = vector.broadcast %43 : vector<1x497xf32> to vector<4x497xf32>
    %45 = arith.mulf %42, %44 : vector<4x497xf32>
    %c24_29 = arith.constant 24 : index
    %c0_30 = arith.constant 0 : index
    %46 = vector.load %arg12[%c24_29, %c0_30] : memref<36x512xf32, #tpu.memory_space<vmem>>, vector<4x497xf32>
    tpu.vector_store %arg12[%c24_29, %c0_30], %45 {strides = array<i32>} : memref<36x512xf32, #tpu.memory_space<vmem>>, vector<4x497xf32>,
    %cst_31 = arith.constant 0.000000e+00 : f32
    %47 = vector.broadcast %cst_31 : f32 to vector<4x16xf32>
    %c28 = arith.constant 28 : index
    %c496 = arith.constant 496 : index
    %48 = vector.load %arg12[%c28, %c496] : memref<36x512xf32, #tpu.memory_space<vmem>>, vector<4x16xf32>
    tpu.vector_store %arg12[%c28, %c496], %47 {strides = array<i32>} : memref<36x512xf32, #tpu.memory_space<vmem>>, vector<4x16xf32>,
    %49 = vector.extract_strided_slice %0 {offsets = [0, 16], sizes = [4, 496], strides = [1, 1]} : vector<4x512xf32> to vector<4x496xf32>
    %c7 = arith.constant 7 : index
    %c0_32 = arith.constant 0 : index
    %50 = vector.load %arg2[%c7, %c0_32] : memref<9x512xf32, #tpu.memory_space<vmem>>, vector<1x496xf32>
    %51 = vector.broadcast %50 : vector<1x496xf32> to vector<4x496xf32>
    %52 = arith.mulf %49, %51 : vector<4x496xf32>
    %c28_33 = arith.constant 28 : index
    %c0_34 = arith.constant 0 : index
    %53 = vector.load %arg12[%c28_33, %c0_34] : memref<36x512xf32, #tpu.memory_space<vmem>>, vector<4x496xf32>
    tpu.vector_store %arg12[%c28_33, %c0_34], %52 {strides = array<i32>} : memref<36x512xf32, #tpu.memory_space<vmem>>, vector<4x496xf32>,
    %cst_35 = arith.constant 0.000000e+00 : f32
    %54 = vector.broadcast %cst_35 : f32 to vector<4x17xf32>
    %c32 = arith.constant 32 : index
    %c495 = arith.constant 495 : index
    %55 = vector.load %arg12[%c32, %c495] : memref<36x512xf32, #tpu.memory_space<vmem>>, vector<4x17xf32>
    tpu.vector_store %arg12[%c32, %c495], %54 {strides = array<i32>} : memref<36x512xf32, #tpu.memory_space<vmem>>, vector<4x17xf32>,
    %56 = vector.extract_strided_slice %0 {offsets = [0, 17], sizes = [4, 495], strides = [1, 1]} : vector<4x512xf32> to vector<4x495xf32>
    %c8_36 = arith.constant 8 : index
    %c0_37 = arith.constant 0 : index
    %57 = vector.load %arg2[%c8_36, %c0_37] : memref<9x512xf32, #tpu.memory_space<vmem>>, vector<1x495xf32>
    %58 = vector.broadcast %57 : vector<1x495xf32> to vector<4x495xf32>
    %59 = arith.mulf %56, %58 : vector<4x495xf32>
    %c32_38 = arith.constant 32 : index
    %c0_39 = arith.constant 0 : index
    %60 = vector.load %arg12[%c32_38, %c0_39] : memref<36x512xf32, #tpu.memory_space<vmem>>, vector<4x495xf32>
    tpu.vector_store %arg12[%c32_38, %c0_39], %59 {strides = array<i32>} : memref<36x512xf32, #tpu.memory_space<vmem>>, vector<4x495xf32>,
    %c0_40 = arith.constant 0 : index
    %c0_41 = arith.constant 0 : index
    %61 = vector.load %arg3[%c0_40, %c0_41] : memref<4x36xf32, #tpu.memory_space<vmem>>, vector<4x36xf32>
    %c0_42 = arith.constant 0 : index
    %c0_43 = arith.constant 0 : index
    %62 = vector.load %arg12[%c0_42, %c0_43] : memref<36x512xf32, #tpu.memory_space<vmem>>, vector<36x512xf32>
    %cst_44 = arith.constant dense<0.000000e+00> : vector<4x512xf32>
    %63 = tpu.matmul %61, %62, %cst_44 {dimension_numbers = #tpu.dot_dimension_numbers<[1], [0], [0], [1], [0, 0, 1, 1], [], []>} : vector<4x36xf32>, vector<36x512xf32>, vector<4x512xf32> -> vector<4x512xf32>
    %c0_45 = arith.constant 0 : index
    %c0_46 = arith.constant 0 : index
    %64 = vector.load %arg4[%c0_45, %c0_46] : memref<4x1xf32, #tpu.memory_space<vmem>>, vector<4x1xf32>
    %65 = vector.broadcast %64 : vector<4x1xf32> to vector<4x512xf32>
    %66 = arith.addf %63, %65 : vector<4x512xf32>
    %cst_47 = arith.constant dense<0.000000e+00> : vector<4xf32>
    %67 = vector.multi_reduction <add>, %66, %cst_47 [1] : vector<4x512xf32> to vector<4xf32>
    %68 = vector.shape_cast %67 : vector<4xf32> to vector<4x1xf32>
    %cst_48 = arith.constant 0.001953125 : f32
    %69 = vector.broadcast %cst_48 : f32 to vector<4x1xf32>
    %70 = arith.mulf %68, %69 : vector<4x1xf32>
    %71 = arith.mulf %66, %66 : vector<4x512xf32>
    %cst_49 = arith.constant dense<0.000000e+00> : vector<4xf32>
    %72 = vector.multi_reduction <add>, %71, %cst_49 [1] : vector<4x512xf32> to vector<4xf32>
    %73 = vector.shape_cast %72 : vector<4xf32> to vector<4x1xf32>
    %cst_50 = arith.constant 0.001953125 : f32
    %74 = vector.broadcast %cst_50 : f32 to vector<4x1xf32>
    %75 = arith.mulf %73, %74 : vector<4x1xf32>
    %76 = arith.mulf %70, %70 : vector<4x1xf32>
    %77 = arith.subf %75, %76 : vector<4x1xf32>
    %78 = vector.broadcast %70 : vector<4x1xf32> to vector<4x512xf32>
    %79 = arith.subf %66, %78 : vector<4x512xf32>
    %cst_51 = arith.constant 9.99999974E-6 : f32
    %80 = vector.broadcast %cst_51 : f32 to vector<4x1xf32>
    %81 = arith.addf %77, %80 : vector<4x1xf32>
    %82 = math.rsqrt %81 : vector<4x1xf32>
    %83 = vector.broadcast %82 : vector<4x1xf32> to vector<4x512xf32>
    %84 = arith.mulf %79, %83 : vector<4x512xf32>
    %c0_52 = arith.constant 0 : index
    %c0_53 = arith.constant 0 : index
    %85 = vector.load %arg5[%c0_52, %c0_53] : memref<4x1xf32, #tpu.memory_space<vmem>>, vector<4x1xf32>
    %86 = vector.broadcast %85 : vector<4x1xf32> to vector<4x512xf32>
    %87 = arith.mulf %84, %86 : vector<4x512xf32>
    %c0_54 = arith.constant 0 : index
    %c0_55 = arith.constant 0 : index
    %88 = vector.load %arg6[%c0_54, %c0_55] : memref<4x1xf32, #tpu.memory_space<vmem>>, vector<4x1xf32>
    %89 = vector.broadcast %88 : vector<4x1xf32> to vector<4x512xf32>
    %90 = arith.addf %87, %89 : vector<4x512xf32>
    %cst_56 = arith.constant 0.000000e+00 : f32
    %91 = vector.broadcast %cst_56 : f32 to vector<4x512xf32>
    %92 = arith.maximumf %90, %91 : vector<4x512xf32>
    %cst_57 = arith.constant 0.000000e+00 : f32
    %93 = vector.broadcast %cst_57 : f32 to vector<4x17xf32>
    %c0_58 = arith.constant 0 : index
    %c0_59 = arith.constant 0 : index
    %94 = vector.load %arg12[%c0_58, %c0_59] : memref<36x512xf32, #tpu.memory_space<vmem>>, vector<4x17xf32>
    tpu.vector_store %arg12[%c0_58, %c0_59], %93 {strides = array<i32>} : memref<36x512xf32, #tpu.memory_space<vmem>>, vector<4x17xf32>,
    %95 = vector.extract_strided_slice %92 {offsets = [0, 0], sizes = [4, 495], strides = [1, 1]} : vector<4x512xf32> to vector<4x495xf32>
    %c0_60 = arith.constant 0 : index
    %c17_61 = arith.constant 17 : index
    %96 = vector.load %arg2[%c0_60, %c17_61] : memref<9x512xf32, #tpu.memory_space<vmem>>, vector<1x495xf32>
    %97 = vector.broadcast %96 : vector<1x495xf32> to vector<4x495xf32>
    %98 = arith.mulf %95, %97 : vector<4x495xf32>
    %c0_62 = arith.constant 0 : index
    %c17_63 = arith.constant 17 : index
    %99 = vector.load %arg12[%c0_62, %c17_63] : memref<36x512xf32, #tpu.memory_space<vmem>>, vector<4x495xf32>
    tpu.vector_store %arg12[%c0_62, %c17_63], %98 {strides = array<i32>} : memref<36x512xf32, #tpu.memory_space<vmem>>, vector<4x495xf32>,
    %cst_64 = arith.constant 0.000000e+00 : f32
    %100 = vector.broadcast %cst_64 : f32 to vector<4x16xf32>
    %c4_65 = arith.constant 4 : index
    %c0_66 = arith.constant 0 : index
    %101 = vector.load %arg12[%c4_65, %c0_66] : memref<36x512xf32, #tpu.memory_space<vmem>>, vector<4x16xf32>
    tpu.vector_store %arg12[%c4_65, %c0_66], %100 {strides = array<i32>} : memref<36x512xf32, #tpu.memory_space<vmem>>, vector<4x16xf32>,
    %102 = vector.extract_strided_slice %92 {offsets = [0, 0], sizes = [4, 496], strides = [1, 1]} : vector<4x512xf32> to vector<4x496xf32>
    %c1_67 = arith.constant 1 : index
    %c16_68 = arith.constant 16 : index
    %103 = vector.load %arg2[%c1_67, %c16_68] : memref<9x512xf32, #tpu.memory_space<vmem>>, vector<1x496xf32>
    %104 = vector.broadcast %103 : vector<1x496xf32> to vector<4x496xf32>
    %105 = arith.mulf %102, %104 : vector<4x496xf32>
    %c4_69 = arith.constant 4 : index
    %c16_70 = arith.constant 16 : index
    %106 = vector.load %arg12[%c4_69, %c16_70] : memref<36x512xf32, #tpu.memory_space<vmem>>, vector<4x496xf32>
    tpu.vector_store %arg12[%c4_69, %c16_70], %105 {strides = array<i32>} : memref<36x512xf32, #tpu.memory_space<vmem>>, vector<4x496xf32>,
    %cst_71 = arith.constant 0.000000e+00 : f32
    %107 = vector.broadcast %cst_71 : f32 to vector<4x15xf32>
    %c8_72 = arith.constant 8 : index
    %c0_73 = arith.constant 0 : index
    %108 = vector.load %arg12[%c8_72, %c0_73] : memref<36x512xf32, #tpu.memory_space<vmem>>, vector<4x15xf32>
    tpu.vector_store %arg12[%c8_72, %c0_73], %107 {strides = array<i32>} : memref<36x512xf32, #tpu.memory_space<vmem>>, vector<4x15xf32>,
    %109 = vector.extract_strided_slice %92 {offsets = [0, 0], sizes = [4, 497], strides = [1, 1]} : vector<4x512xf32> to vector<4x497xf32>
    %c2_74 = arith.constant 2 : index
    %c15_75 = arith.constant 15 : index
    %110 = vector.load %arg2[%c2_74, %c15_75] : memref<9x512xf32, #tpu.memory_space<vmem>>, vector<1x497xf32>
    %111 = vector.broadcast %110 : vector<1x497xf32> to vector<4x497xf32>
    %112 = arith.mulf %109, %111 : vector<4x497xf32>
    %c8_76 = arith.constant 8 : index
    %c15_77 = arith.constant 15 : index
    %113 = vector.load %arg12[%c8_76, %c15_77] : memref<36x512xf32, #tpu.memory_space<vmem>>, vector<4x497xf32>
    tpu.vector_store %arg12[%c8_76, %c15_77], %112 {strides = array<i32>} : memref<36x512xf32, #tpu.memory_space<vmem>>, vector<4x497xf32>,
    %cst_78 = arith.constant 0.000000e+00 : f32
    %114 = vector.broadcast %cst_78 : f32 to vector<4x1xf32>
    %c12_79 = arith.constant 12 : index
    %c0_80 = arith.constant 0 : index
    %115 = vector.load %arg12[%c12_79, %c0_80] : memref<36x512xf32, #tpu.memory_space<vmem>>, vector<4x1xf32>
    tpu.vector_store %arg12[%c12_79, %c0_80], %114 {strides = array<i32>} : memref<36x512xf32, #tpu.memory_space<vmem>>, vector<4x1xf32>,
    %116 = vector.extract_strided_slice %92 {offsets = [0, 0], sizes = [4, 511], strides = [1, 1]} : vector<4x512xf32> to vector<4x511xf32>
    %c3_81 = arith.constant 3 : index
    %c1_82 = arith.constant 1 : index
    %117 = vector.load %arg2[%c3_81, %c1_82] : memref<9x512xf32, #tpu.memory_space<vmem>>, vector<1x511xf32>
    %118 = vector.broadcast %117 : vector<1x511xf32> to vector<4x511xf32>
    %119 = arith.mulf %116, %118 : vector<4x511xf32>
    %c12_83 = arith.constant 12 : index
    %c1_84 = arith.constant 1 : index
    %120 = vector.load %arg12[%c12_83, %c1_84] : memref<36x512xf32, #tpu.memory_space<vmem>>, vector<4x511xf32>
    tpu.vector_store %arg12[%c12_83, %c1_84], %119 {strides = array<i32>} : memref<36x512xf32, #tpu.memory_space<vmem>>, vector<4x511xf32>,
    %c4_85 = arith.constant 4 : index
    %c0_86 = arith.constant 0 : index
    %121 = vector.load %arg2[%c4_85, %c0_86] : memref<9x512xf32, #tpu.memory_space<vmem>>, vector<1x512xf32>
    %122 = vector.broadcast %121 : vector<1x512xf32> to vector<4x512xf32>
    %123 = arith.mulf %92, %122 : vector<4x512xf32>
    %c16_87 = arith.constant 16 : index
    %c0_88 = arith.constant 0 : index
    %124 = vector.load %arg12[%c16_87, %c0_88] : memref<36x512xf32, #tpu.memory_space<vmem>>, vector<4x512xf32>
    tpu.vector_store %arg12[%c16_87, %c0_88], %123 {strides = array<i32>} : memref<36x512xf32, #tpu.memory_space<vmem>>, vector<4x512xf32>,
    %cst_89 = arith.constant 0.000000e+00 : f32
    %125 = vector.broadcast %cst_89 : f32 to vector<4x1xf32>
    %c20_90 = arith.constant 20 : index
    %c511_91 = arith.constant 511 : index
    %126 = vector.load %arg12[%c20_90, %c511_91] : memref<36x512xf32, #tpu.memory_space<vmem>>, vector<4x1xf32>
    tpu.vector_store %arg12[%c20_90, %c511_91], %125 {strides = array<i32>} : memref<36x512xf32, #tpu.memory_space<vmem>>, vector<4x1xf32>,
    %127 = vector.extract_strided_slice %92 {offsets = [0, 1], sizes = [4, 511], strides = [1, 1]} : vector<4x512xf32> to vector<4x511xf32>
    %c5_92 = arith.constant 5 : index
    %c0_93 = arith.constant 0 : index
    %128 = vector.load %arg2[%c5_92, %c0_93] : memref<9x512xf32, #tpu.memory_space<vmem>>, vector<1x511xf32>
    %129 = vector.broadcast %128 : vector<1x511xf32> to vector<4x511xf32>
    %130 = arith.mulf %127, %129 : vector<4x511xf32>
    %c20_94 = arith.constant 20 : index
    %c0_95 = arith.constant 0 : index
    %131 = vector.load %arg12[%c20_94, %c0_95] : memref<36x512xf32, #tpu.memory_space<vmem>>, vector<4x511xf32>
    tpu.vector_store %arg12[%c20_94, %c0_95], %130 {strides = array<i32>} : memref<36x512xf32, #tpu.memory_space<vmem>>, vector<4x511xf32>,
    %cst_96 = arith.constant 0.000000e+00 : f32
    %132 = vector.broadcast %cst_96 : f32 to vector<4x15xf32>
    %c24_97 = arith.constant 24 : index
    %c497_98 = arith.constant 497 : index
    %133 = vector.load %arg12[%c24_97, %c497_98] : memref<36x512xf32, #tpu.memory_space<vmem>>, vector<4x15xf32>
    tpu.vector_store %arg12[%c24_97, %c497_98], %132 {strides = array<i32>} : memref<36x512xf32, #tpu.memory_space<vmem>>, vector<4x15xf32>,
    %134 = vector.extract_strided_slice %92 {offsets = [0, 15], sizes = [4, 497], strides = [1, 1]} : vector<4x512xf32> to vector<4x497xf32>
    %c6_99 = arith.constant 6 : index
    %c0_100 = arith.constant 0 : index
    %135 = vector.load %arg2[%c6_99, %c0_100] : memref<9x512xf32, #tpu.memory_space<vmem>>, vector<1x497xf32>
    %136 = vector.broadcast %135 : vector<1x497xf32> to vector<4x497xf32>
    %137 = arith.mulf %134, %136 : vector<4x497xf32>
    %c24_101 = arith.constant 24 : index
    %c0_102 = arith.constant 0 : index
    %138 = vector.load %arg12[%c24_101, %c0_102] : memref<36x512xf32, #tpu.memory_space<vmem>>, vector<4x497xf32>
    tpu.vector_store %arg12[%c24_101, %c0_102], %137 {strides = array<i32>} : memref<36x512xf32, #tpu.memory_space<vmem>>, vector<4x497xf32>,
    %cst_103 = arith.constant 0.000000e+00 : f32
    %139 = vector.broadcast %cst_103 : f32 to vector<4x16xf32>
    %c28_104 = arith.constant 28 : index
    %c496_105 = arith.constant 496 : index
    %140 = vector.load %arg12[%c28_104, %c496_105] : memref<36x512xf32, #tpu.memory_space<vmem>>, vector<4x16xf32>
    tpu.vector_store %arg12[%c28_104, %c496_105], %139 {strides = array<i32>} : memref<36x512xf32, #tpu.memory_space<vmem>>, vector<4x16xf32>,
    %141 = vector.extract_strided_slice %92 {offsets = [0, 16], sizes = [4, 496], strides = [1, 1]} : vector<4x512xf32> to vector<4x496xf32>
    %c7_106 = arith.constant 7 : index
    %c0_107 = arith.constant 0 : index
    %142 = vector.load %arg2[%c7_106, %c0_107] : memref<9x512xf32, #tpu.memory_space<vmem>>, vector<1x496xf32>
    %143 = vector.broadcast %142 : vector<1x496xf32> to vector<4x496xf32>
    %144 = arith.mulf %141, %143 : vector<4x496xf32>
    %c28_108 = arith.constant 28 : index
    %c0_109 = arith.constant 0 : index
    %145 = vector.load %arg12[%c28_108, %c0_109] : memref<36x512xf32, #tpu.memory_space<vmem>>, vector<4x496xf32>
    tpu.vector_store %arg12[%c28_108, %c0_109], %144 {strides = array<i32>} : memref<36x512xf32, #tpu.memory_space<vmem>>, vector<4x496xf32>,
    %cst_110 = arith.constant 0.000000e+00 : f32
    %146 = vector.broadcast %cst_110 : f32 to vector<4x17xf32>
    %c32_111 = arith.constant 32 : index
    %c495_112 = arith.constant 495 : index
    %147 = vector.load %arg12[%c32_111, %c495_112] : memref<36x512xf32, #tpu.memory_space<vmem>>, vector<4x17xf32>
    tpu.vector_store %arg12[%c32_111, %c495_112], %146 {strides = array<i32>} : memref<36x512xf32, #tpu.memory_space<vmem>>, vector<4x17xf32>,
    %148 = vector.extract_strided_slice %92 {offsets = [0, 17], sizes = [4, 495], strides = [1, 1]} : vector<4x512xf32> to vector<4x495xf32>
    %c8_113 = arith.constant 8 : index
    %c0_114 = arith.constant 0 : index
    %149 = vector.load %arg2[%c8_113, %c0_114] : memref<9x512xf32, #tpu.memory_space<vmem>>, vector<1x495xf32>
    %150 = vector.broadcast %149 : vector<1x495xf32> to vector<4x495xf32>
    %151 = arith.mulf %148, %150 : vector<4x495xf32>
    %c32_115 = arith.constant 32 : index
    %c0_116 = arith.constant 0 : index
    %152 = vector.load %arg12[%c32_115, %c0_116] : memref<36x512xf32, #tpu.memory_space<vmem>>, vector<4x495xf32>
    tpu.vector_store %arg12[%c32_115, %c0_116], %151 {strides = array<i32>} : memref<36x512xf32, #tpu.memory_space<vmem>>, vector<4x495xf32>,
    %c0_117 = arith.constant 0 : index
    %c0_118 = arith.constant 0 : index
    %153 = vector.load %arg7[%c0_117, %c0_118] : memref<4x36xf32, #tpu.memory_space<vmem>>, vector<4x36xf32>
    %c0_119 = arith.constant 0 : index
    %c0_120 = arith.constant 0 : index
    %154 = vector.load %arg12[%c0_119, %c0_120] : memref<36x512xf32, #tpu.memory_space<vmem>>, vector<36x512xf32>
    %cst_121 = arith.constant dense<0.000000e+00> : vector<4x512xf32>
    %155 = tpu.matmul %153, %154, %cst_121 {dimension_numbers = #tpu.dot_dimension_numbers<[1], [0], [0], [1], [0, 0, 1, 1], [], []>} : vector<4x36xf32>, vector<36x512xf32>, vector<4x512xf32> -> vector<4x512xf32>
    %c0_122 = arith.constant 0 : index
    %c0_123 = arith.constant 0 : index
    %156 = vector.load %arg8[%c0_122, %c0_123] : memref<4x1xf32, #tpu.memory_space<vmem>>, vector<4x1xf32>
    %157 = vector.broadcast %156 : vector<4x1xf32> to vector<4x512xf32>
    %158 = arith.addf %155, %157 : vector<4x512xf32>
    %cst_124 = arith.constant dense<0.000000e+00> : vector<4xf32>
    %159 = vector.multi_reduction <add>, %158, %cst_124 [1] : vector<4x512xf32> to vector<4xf32>
    %160 = vector.shape_cast %159 : vector<4xf32> to vector<4x1xf32>
    %cst_125 = arith.constant 0.001953125 : f32
    %161 = vector.broadcast %cst_125 : f32 to vector<4x1xf32>
    %162 = arith.mulf %160, %161 : vector<4x1xf32>
    %163 = arith.mulf %158, %158 : vector<4x512xf32>
    %cst_126 = arith.constant dense<0.000000e+00> : vector<4xf32>
    %164 = vector.multi_reduction <add>, %163, %cst_126 [1] : vector<4x512xf32> to vector<4xf32>
    %165 = vector.shape_cast %164 : vector<4xf32> to vector<4x1xf32>
    %cst_127 = arith.constant 0.001953125 : f32
    %166 = vector.broadcast %cst_127 : f32 to vector<4x1xf32>
    %167 = arith.mulf %165, %166 : vector<4x1xf32>
    %168 = arith.mulf %162, %162 : vector<4x1xf32>
    %169 = arith.subf %167, %168 : vector<4x1xf32>
    %170 = vector.broadcast %162 : vector<4x1xf32> to vector<4x512xf32>
    %171 = arith.subf %158, %170 : vector<4x512xf32>
    %cst_128 = arith.constant 9.99999974E-6 : f32
    %172 = vector.broadcast %cst_128 : f32 to vector<4x1xf32>
    %173 = arith.addf %169, %172 : vector<4x1xf32>
    %174 = math.rsqrt %173 : vector<4x1xf32>
    %175 = vector.broadcast %174 : vector<4x1xf32> to vector<4x512xf32>
    %176 = arith.mulf %171, %175 : vector<4x512xf32>
    %c0_129 = arith.constant 0 : index
    %c0_130 = arith.constant 0 : index
    %177 = vector.load %arg9[%c0_129, %c0_130] : memref<4x1xf32, #tpu.memory_space<vmem>>, vector<4x1xf32>
    %178 = vector.broadcast %177 : vector<4x1xf32> to vector<4x512xf32>
    %179 = arith.mulf %176, %178 : vector<4x512xf32>
    %c0_131 = arith.constant 0 : index
    %c0_132 = arith.constant 0 : index
    %180 = vector.load %arg10[%c0_131, %c0_132] : memref<4x1xf32, #tpu.memory_space<vmem>>, vector<4x1xf32>
    %181 = vector.broadcast %180 : vector<4x1xf32> to vector<4x512xf32>
    %182 = arith.addf %179, %181 : vector<4x512xf32>
    %183 = arith.addf %182, %0 : vector<4x512xf32>
    %cst_133 = arith.constant 0.000000e+00 : f32
    %184 = vector.broadcast %cst_133 : f32 to vector<4x512xf32>
    %185 = arith.maximumf %183, %184 : vector<4x512xf32>
    %c0_134 = arith.constant 0 : index
    %c0_135 = arith.constant 0 : index
    %186 = vector.load %arg11[%c0_134, %c0_135] : memref<4x512xf32, #tpu.memory_space<vmem>>, vector<4x512xf32>
    tpu.vector_store %arg11[%c0_134, %c0_135], %185 {strides = array<i32>} : memref<4x512xf32, #tpu.memory_space<vmem>>, vector<4x512xf32>,
    return
  }
  func.func @transform_0(%arg0: i32) -> (i32, i32) {
    %c0_i32 = arith.constant 0 : i32
    %c0_i32_0 = arith.constant 0 : i32
    %c0_i32_1 = arith.constant 0 : i32
    return %c0_i32, %c0_i32_0 : i32, i32
  }
  func.func @transform_1(%arg0: i32) -> (i32, i32) {
    %c0_i32 = arith.constant 0 : i32
    %c0_i32_0 = arith.constant 0 : i32
    %c0_i32_1 = arith.constant 0 : i32
    return %c0_i32, %c0_i32_0 : i32, i32
  }
  func.func @transform_2(%arg0: i32) -> (i32, i32) {
    %c0_i32 = arith.constant 0 : i32
    %c0_i32_0 = arith.constant 0 : i32
    %c0_i32_1 = arith.constant 0 : i32
    return %c0_i32, %c0_i32_0 : i32, i32
  }
  func.func @transform_3(%arg0: i32) -> (i32, i32) {
    %c0_i32 = arith.constant 0 : i32
    %c0_i32_0 = arith.constant 0 : i32
    %c0_i32_1 = arith.constant 0 : i32
    return %c0_i32, %c0_i32_0 : i32, i32
  }
  func.func @transform_4(%arg0: i32) -> (i32, i32) {
    %c0_i32 = arith.constant 0 : i32
    %c0_i32_0 = arith.constant 0 : i32
    %c0_i32_1 = arith.constant 0 : i32
    return %c0_i32, %c0_i32_0 : i32, i32
  }
  func.func @transform_5(%arg0: i32) -> (i32, i32) {
    %c0_i32 = arith.constant 0 : i32
    %c0_i32_0 = arith.constant 0 : i32
    %c0_i32_1 = arith.constant 0 : i32
    return %c0_i32, %c0_i32_0 : i32, i32
  }
  func.func @transform_6(%arg0: i32) -> (i32, i32) {
    %c0_i32 = arith.constant 0 : i32
    %c0_i32_0 = arith.constant 0 : i32
    %c0_i32_1 = arith.constant 0 : i32
    return %c0_i32, %c0_i32_0 : i32, i32
  }
  func.func @transform_7(%arg0: i32) -> (i32, i32) {
    %c0_i32 = arith.constant 0 : i32
    %c0_i32_0 = arith.constant 0 : i32
    %c0_i32_1 = arith.constant 0 : i32
    return %c0_i32, %c0_i32_0 : i32, i32
  }
  func.func @transform_8(%arg0: i32) -> (i32, i32) {
    %c0_i32 = arith.constant 0 : i32
    %c0_i32_0 = arith.constant 0 : i32
    %c0_i32_1 = arith.constant 0 : i32
    return %c0_i32, %c0_i32_0 : i32, i32
  }
  func.func @transform_9(%arg0: i32) -> (i32, i32) {
    %c0_i32 = arith.constant 0 : i32
    %c0_i32_0 = arith.constant 0 : i32
    %c0_i32_1 = arith.constant 0 : i32
    return %c0_i32, %c0_i32_0 : i32, i32
  }
  func.func @transform_10(%arg0: i32) -> (i32, i32) {
    %c0_i32 = arith.constant 0 : i32
    %c0_i32_0 = arith.constant 0 : i32
    %c0_i32_1 = arith.constant 0 : i32
    return %c0_i32, %c0_i32_0 : i32, i32
  }
}

</mosaic_0001>

<llo_original>
// kernel: residual_forward.1
$region0: #{residual_forward.1}
  #allocation0 [shape = 'u32[]', space=smem, size = 0x4, offset = 0x4, fixed_abs, tag = 'smem constant byte address 0x4 - core index']
  #allocation1 [shape = 'u32[144,128]{1,0:T(1,128)}', space=vmem, size = 0x12000, scoped, tag = 'internal scratch']
  #allocation2 [shape = 'f32[36,512]{1,0:T(8,128)}', space=vmem, size = 0x14000, scoped, tag = 'scratch operand']
  %s0 = inlined_call_operand.vmem [shape: f32[4,512], index: 0, kind: input, shape index: {}]
  %s1 = inlined_call_operand.vmem [shape: f32[9,512], index: 1, kind: input, shape index: {}]
  %s2 = inlined_call_operand.vmem [shape: f32[4,36], index: 2, kind: input, shape index: {}]
  %s3 = inlined_call_operand.vmem [shape: f32[4,1], index: 3, kind: input, shape index: {}]
  %s4 = inlined_call_operand.vmem [shape: f32[4,1], index: 4, kind: input, shape index: {}]
  %s5 = inlined_call_operand.vmem [shape: f32[4,1], index: 5, kind: input, shape index: {}]
  %s6 = inlined_call_operand.vmem [shape: f32[4,36], index: 6, kind: input, shape index: {}]
  %s7 = inlined_call_operand.vmem [shape: f32[4,1], index: 7, kind: input, shape index: {}]
  %s8 = inlined_call_operand.vmem [shape: f32[4,1], index: 8, kind: input, shape index: {}]
  %s9 = inlined_call_operand.vmem [shape: f32[4,1], index: 9, kind: input, shape index: {}]
  %s10 = inlined_call_operand.vmem [shape: f32[4,512], index: 10, kind: output, shape index: {}]
  %s11 = sld [smem:[#allocation0]]
  $region50: #{residual_forward.1} parent=0
    _
  %s13 = ssub.s32 1, %s11
  %s14 = scalar_select 0, %s13, %s11
  // Predicated region
  $region2: #{residual_forward.1} parent=0 // pred_check
    _
  $region3: #{residual_forward.1} parent=0 // pred_check_branch
    %16 = sbr.rel (0) target = $region5
  $region4: #{residual_forward.1} parent=0 // pred_region
    _
  $region5: #{residual_forward.1} parent=0 // pred_fallthru
    _
  // Predicated region
  $region6: #{residual_forward.1} parent=0 // pred_check
    _
  $region7: #{residual_forward.1} parent=0 // pred_check_branch
    %18 = sbr.rel (0) target = $region9
  $region8: #{residual_forward.1} parent=0 // pred_region
    _
  $region9: #{residual_forward.1} parent=0 // pred_fallthru
    _
  // Predicated region
  $region10: #{residual_forward.1} parent=0 // pred_check
    _
  $region11: #{residual_forward.1} parent=0 // pred_check_branch
    %20 = sbr.rel (0) target = $region13
  $region12: #{residual_forward.1} parent=0 // pred_region
    _
  $region13: #{residual_forward.1} parent=0 // pred_fallthru
    _
  // Predicated region
  $region14: #{residual_forward.1} parent=0 // pred_check
    _
  $region15: #{residual_forward.1} parent=0 // pred_check_branch
    %22 = sbr.rel (0) target = $region17
  $region16: #{residual_forward.1} parent=0 // pred_region
    _
  $region17: #{residual_forward.1} parent=0 // pred_fallthru
    _
  // Predicated region
  $region18: #{residual_forward.1} parent=0 // pred_check
    _
  $region19: #{residual_forward.1} parent=0 // pred_check_branch
    %24 = sbr.rel (0) target = $region21
  $region20: #{residual_forward.1} parent=0 // pred_region
    _
  $region21: #{residual_forward.1} parent=0 // pred_fallthru
    _
  // Predicated region
  $region22: #{residual_forward.1} parent=0 // pred_check
    _
  $region23: #{residual_forward.1} parent=0 // pred_check_branch
    %26 = sbr.rel (0) target = $region25
  $region24: #{residual_forward.1} parent=0 // pred_region
    _
  $region25: #{residual_forward.1} parent=0 // pred_fallthru
    _
  // Predicated region
  $region26: #{residual_forward.1} parent=0 // pred_check
    _
  $region27: #{residual_forward.1} parent=0 // pred_check_branch
    %28 = sbr.rel (0) target = $region29
  $region28: #{residual_forward.1} parent=0 // pred_region
    _
  $region29: #{residual_forward.1} parent=0 // pred_fallthru
    _
  // Predicated region
  $region30: #{residual_forward.1} parent=0 // pred_check
    _
  $region31: #{residual_forward.1} parent=0 // pred_check_branch
    %30 = sbr.rel (0) target = $region33
  $region32: #{residual_forward.1} parent=0 // pred_region
    _
  $region33: #{residual_forward.1} parent=0 // pred_fallthru
    _
  // Predicated region
  $region34: #{residual_forward.1} parent=0 // pred_check
    _
  $region35: #{residual_forward.1} parent=0 // pred_check_branch
    %32 = sbr.rel (0) target = $region37
  $region36: #{residual_forward.1} parent=0 // pred_region
    _
  $region37: #{residual_forward.1} parent=0 // pred_fallthru
    _
  // Predicated region
  $region38: #{residual_forward.1} parent=0 // pred_check
    _
  $region39: #{residual_forward.1} parent=0 // pred_check_branch
    %34 = sbr.rel (0) target = $region41
  $region40: #{residual_forward.1} parent=0 // pred_region
    _
  $region41: #{residual_forward.1} parent=0 // pred_fallthru
    _
  %v35 = vld [vmem:[%s0] sm:$0xff]
  %v36 = vld [vmem:[%s0 + $0x8] sm:$0xff]
  %vm37 = vcmask 134144
  %38 = vst.msk [vmem:[#allocation2] sm:$0xf] %vm37, 0.0
  %v39 = vld [vmem:[%s1] ss:$8 sm:$0xf]
  %v41 = vlaneseq
  %v42 = vshrl.u32 %v41, 7
  %v43 = vsub.s32 0, %v42
  %v44 = vrot.slane %v39, %v43
  %v45 = vlaneseq
  %v46 = vshrl.u32 %v45, 7
  %v47 = vsub.s32 1, %v46
  %v48 = vrot.slane %v39, %v47
  %v49 = vlaneseq
  %v50 = vshrl.u32 %v49, 7
  %v51 = vsub.s32 2, %v50
  %v52 = vrot.slane %v39, %v51
  %v53 = vlaneseq
  %v54 = vshrl.u32 %v53, 7
  %v55 = vsub.s32 3, %v54
  %v56 = vrot.slane %v39, %v55
  %v57 = vcombine.low %v44, %v48
  %v58 = vcombine.low %v52, %v56
  %59 = vrot.lane.b32.xlu0 %v57, 111
  %v60 = vpop.permute.xlu0 %59
  %61 = vrot.lane.b32.xlu0 %v58, 111
  %v62 = vpop.permute.xlu0 %61
  %v63 = vrot.slane %v60, 4
  %v64 = vrot.slane %v62, 4
  %vm65 = vcmask 1043456
  %v66 = vsel %vm65, %v63, %v64
  %vm67 = vcmask 908288
  %v68 = vsel %vm67, %v60, %v66
  %v69 = vsel %vm67, %v62, %v64
  %v72 = vmul.f32 %v35, %v68
  %v73 = vmul.f32 %v36, %v69
  %v76 = vcombine.high %v72, %v72
  %v77 = vcombine.high %v73, %v73
  %78 = vrot.lane.b32.xlu0 %v72, 17
  %v79 = vpop.permute.xlu0 %78
  %80 = vrot.lane.b32.xlu0 %v76, 17
  %v81 = vpop.permute.xlu0 %80
  %82 = vrot.lane.b32.xlu0 %v73, 17
  %v83 = vpop.permute.xlu0 %82
  %84 = vrot.lane.b32.xlu0 %v77, 17
  %v85 = vpop.permute.xlu0 %84
  %vm86 = vcmask 138240
  %v87 = vsel %vm86, %v79, %v81
  %v88 = vsel %vm86, %v81, %v83
  %v89 = vsel %vm86, %v83, %v85
  %vm94 = vcmask 1043592
  %95 = vst.msk [vmem:[#allocation2] sm:$0xf] %vm94, %v79
  %96 = vst [vmem:[#allocation2 + $0x8] sm:$0xf] %v87
  %97 = vst [vmem:[#allocation2 + $0x10] sm:$0xf] %v88
  %98 = vst [vmem:[#allocation2 + $0x18] sm:$0xf] %v89
  %vm99 = vcmask 130052
  %100 = vst.msk [vmem:[#allocation2] sm:$0xf0] %vm99, 0.0
  %s101 = scalar_lea.vmem %s1, 1
  %v102 = vld [vmem:[%s101] ss:$8 sm:$0xf]
  %v104 = vlaneseq
  %v105 = vshrl.u32 %v104, 7
  %v106 = vsub.s32 0, %v105
  %v107 = vrot.slane %v102, %v106
  %v108 = vlaneseq
  %v109 = vshrl.u32 %v108, 7
  %v110 = vsub.s32 1, %v109
  %v111 = vrot.slane %v102, %v110
  %v112 = vlaneseq
  %v113 = vshrl.u32 %v112, 7
  %v114 = vsub.s32 2, %v113
  %v115 = vrot.slane %v102, %v114
  %v116 = vlaneseq
  %v117 = vshrl.u32 %v116, 7
  %v118 = vsub.s32 3, %v117
  %v119 = vrot.slane %v102, %v118
  %v120 = vcombine.low %v107, %v111
  %v121 = vcombine.low %v115, %v119
  %122 = vrot.lane.b32.xlu0 %v120, 112
  %v123 = vpop.permute.xlu0 %122
  %124 = vrot.lane.b32.xlu0 %v121, 112
  %v125 = vpop.permute.xlu0 %124
  %v126 = vrot.slane %v123, 4
  %v127 = vrot.slane %v125, 4
  %v128 = vsel %vm65, %v126, %v127
  %vm129 = vcmask 916480
  %v130 = vsel %vm129, %v123, %v128
  %v131 = vsel %vm129, %v125, %v127
  %v134 = vmul.f32 %v35, %v130
  %v135 = vmul.f32 %v36, %v131
  %v138 = vcombine.low %v134, %v134
  %v139 = vcombine.low %v135, %v135
  %140 = vrot.lane.b32.xlu0 %v138, 16
  %v141 = vpop.permute.xlu0 %140
  %142 = vrot.lane.b32.xlu0 %v134, 16
  %v143 = vpop.permute.xlu0 %142
  %144 = vrot.lane.b32.xlu0 %v139, 16
  %v145 = vpop.permute.xlu0 %144
  %146 = vrot.lane.b32.xlu0 %v135, 16
  %v147 = vpop.permute.xlu0 %146
  %vm148 = vcmask 130048
  %v149 = vsel %vm148, %v141, %v143
  %v150 = vsel %vm148, %v143, %v145
  %v151 = vsel %vm148, %v145, %v147
  %vm156 = vcmask 1047684
  %157 = vst.msk [vmem:[#allocation2] sm:$0xf0] %vm156, %v141
  %158 = vst [vmem:[#allocation2 + $0x8] sm:$0xf0] %v149
  %159 = vst [vmem:[#allocation2 + $0x10] sm:$0xf0] %v150
  %160 = vst [vmem:[#allocation2 + $0x18] sm:$0xf0] %v151
  %vm161 = vcmask 117760
  %162 = vst.msk [vmem:[#allocation2 + $0x20] sm:$0xf] %vm161, 0.0
  %s163 = scalar_lea.vmem %s1, 2
  %v164 = vld [vmem:[%s163] ss:$8 sm:$0xf]
  %v166 = vlaneseq
  %v167 = vshrl.u32 %v166, 7
  %v168 = vsub.s32 0, %v167
  %v169 = vrot.slane %v164, %v168
  %v170 = vlaneseq
  %v171 = vshrl.u32 %v170, 7
  %v172 = vsub.s32 1, %v171
  %v173 = vrot.slane %v164, %v172
  %v174 = vlaneseq
  %v175 = vshrl.u32 %v174, 7
  %v176 = vsub.s32 2, %v175
  %v177 = vrot.slane %v164, %v176
  %v178 = vlaneseq
  %v179 = vshrl.u32 %v178, 7
  %v180 = vsub.s32 3, %v179
  %v181 = vrot.slane %v164, %v180
  %v182 = vcombine.low %v169, %v173
  %v183 = vcombine.low %v177, %v181
  %184 = vrot.lane.b32.xlu0 %v182, 113
  %v185 = vpop.permute.xlu0 %184
  %186 = vrot.lane.b32.xlu0 %v183, 113
  %v187 = vpop.permute.xlu0 %186
  %v188 = vrot.slane %v185, 4
  %v189 = vrot.slane %v187, 4
  %v190 = vsel %vm65, %v188, %v189
  %vm191 = vcmask 924672
  %v192 = vsel %vm191, %v185, %v190
  %v193 = vsel %vm191, %v187, %v189
  %v196 = vmul.f32 %v35, %v192
  %v197 = vmul.f32 %v36, %v193
  %v200 = vcombine.high %v196, %v196
  %v201 = vcombine.high %v197, %v197
  %202 = vrot.lane.b32.xlu0 %v196, 15
  %v203 = vpop.permute.xlu0 %202
  %204 = vrot.lane.b32.xlu0 %v200, 15
  %v205 = vpop.permute.xlu0 %204
  %206 = vrot.lane.b32.xlu0 %v197, 15
  %v207 = vpop.permute.xlu0 %206
  %208 = vrot.lane.b32.xlu0 %v201, 15
  %v209 = vpop.permute.xlu0 %208
  %vm210 = vcmask 121856
  %v211 = vsel %vm210, %v203, %v205
  %v212 = vsel %vm210, %v205, %v207
  %v213 = vsel %vm210, %v207, %v209
  %vm218 = vcmask 1043576
  %219 = vst.msk [vmem:[#allocation2 + $0x20] sm:$0xf] %vm218, %v203
  %220 = vst [vmem:[#allocation2 + $0x28] sm:$0xf] %v211
  %221 = vst [vmem:[#allocation2 + $0x30] sm:$0xf] %v212
  %222 = vst [vmem:[#allocation2 + $0x38] sm:$0xf] %v213
  %vm223 = vcmask 7172
  %224 = vst.msk [vmem:[#allocation2 + $0x20] sm:$0xf0] %vm223, 0.0
  %s225 = scalar_lea.vmem %s1, 3
  %v226 = vld [vmem:[%s225] ss:$8 sm:$0xf]
  %v228 = vlaneseq
  %v229 = vshrl.u32 %v228, 7
  %v230 = vsub.s32 0, %v229
  %v231 = vrot.slane %v226, %v230
  %v232 = vlaneseq
  %v233 = vshrl.u32 %v232, 7
  %v234 = vsub.s32 1, %v233
  %v235 = vrot.slane %v226, %v234
  %v236 = vlaneseq
  %v237 = vshrl.u32 %v236, 7
  %v238 = vsub.s32 2, %v237
  %v239 = vrot.slane %v226, %v238
  %v240 = vlaneseq
  %v241 = vshrl.u32 %v240, 7
  %v242 = vsub.s32 3, %v241
  %v243 = vrot.slane %v226, %v242
  %v244 = vcombine.low %v231, %v235
  %v245 = vcombine.low %v239, %v243
  %246 = vrot.lane.b32.xlu0 %v244, 127
  %v247 = vpop.permute.xlu0 %246
  %248 = vrot.lane.b32.xlu0 %v245, 127
  %v249 = vpop.permute.xlu0 %248
  %v250 = vrot.slane %v247, 4
  %v251 = vrot.slane %v249, 4
  %v252 = vsel %vm65, %v250, %v251
  %vm253 = vcmask 1039360
  %v254 = vsel %vm253, %v247, %v252
  %v255 = vsel %vm253, %v249, %v251
  %v258 = vmul.f32 %v35, %v254
  %v259 = vmul.f32 %v36, %v255
  %v262 = vcombine.low %v258, %v258
  %v263 = vcombine.low %v259, %v259
  %264 = vrot.lane.b32.xlu0 %v262, 1
  %v265 = vpop.permute.xlu0 %264
  %266 = vrot.lane.b32.xlu0 %v258, 1
  %v267 = vpop.permute.xlu0 %266
  %268 = vrot.lane.b32.xlu0 %v263, 1
  %v269 = vpop.permute.xlu0 %268
  %270 = vrot.lane.b32.xlu0 %v259, 1
  %v271 = vpop.permute.xlu0 %270
  %vm272 = vcmask 7168
  %v273 = vsel %vm272, %v265, %v267
  %v274 = vsel %vm272, %v267, %v269
  %v275 = vsel %vm272, %v269, %v271
  %vm280 = vcmask 1047564
  %281 = vst.msk [vmem:[#allocation2 + $0x20] sm:$0xf0] %vm280, %v265
  %282 = vst [vmem:[#allocation2 + $0x28] sm:$0xf0] %v273
  %283 = vst [vmem:[#allocation2 + $0x30] sm:$0xf0] %v274
  %284 = vst [vmem:[#allocation2 + $0x38] sm:$0xf0] %v275
  %s285 = scalar_lea.vmem %s1, 4
  %v286 = vld [vmem:[%s285] ss:$8 sm:$0xf]
  %v288 = vlaneseq
  %v289 = vshrl.u32 %v288, 7
  %v290 = vsub.s32 0, %v289
  %v291 = vrot.slane %v286, %v290
  %v292 = vlaneseq
  %v293 = vshrl.u32 %v292, 7
  %v294 = vsub.s32 1, %v293
  %v295 = vrot.slane %v286, %v294
  %v296 = vlaneseq
  %v297 = vshrl.u32 %v296, 7
  %v298 = vsub.s32 2, %v297
  %v299 = vrot.slane %v286, %v298
  %v300 = vlaneseq
  %v301 = vshrl.u32 %v300, 7
  %v302 = vsub.s32 3, %v301
  %v303 = vrot.slane %v286, %v302
  %v304 = vcombine.low %v291, %v295
  %v305 = vcombine.low %v299, %v303
  %v308 = vmul.f32 %v35, %v304
  %v309 = vmul.f32 %v36, %v305
  %v312 = vcombine.high %v308, %v308
  %v313 = vcombine.high %v309, %v309
  %316 = vst [vmem:[#allocation2 + $0x40] sm:$0xf] %v308
  %317 = vst [vmem:[#allocation2 + $0x48] sm:$0xf] %v312
  %318 = vst [vmem:[#allocation2 + $0x50] sm:$0xf] %v309
  %319 = vst [vmem:[#allocation2 + $0x58] sm:$0xf] %v313
  %vm320 = vcmask 1048572
  %321 = vst.msk [vmem:[#allocation2 + $0x58] sm:$0xf0] %vm320, 0.0
  %s322 = scalar_lea.vmem %s1, 5
  %v323 = vld [vmem:[%s322] ss:$8 sm:$0xf]
  %v325 = vlaneseq
  %v326 = vshrl.u32 %v325, 7
  %v327 = vsub.s32 0, %v326
  %v328 = vrot.slane %v323, %v327
  %v329 = vlaneseq
  %v330 = vshrl.u32 %v329, 7
  %v331 = vsub.s32 1, %v330
  %v332 = vrot.slane %v323, %v331
  %v333 = vlaneseq
  %v334 = vshrl.u32 %v333, 7
  %v335 = vsub.s32 2, %v334
  %v336 = vrot.slane %v323, %v335
  %v337 = vlaneseq
  %v338 = vshrl.u32 %v337, 7
  %v339 = vsub.s32 3, %v338
  %v340 = vrot.slane %v323, %v339
  %v341 = vcombine.low %v328, %v332
  %v342 = vcombine.low %v336, %v340
  %343 = vrot.lane.b32.xlu0 %v341, 1
  %v344 = vpop.permute.xlu0 %343
  %345 = vrot.lane.b32.xlu0 %v342, 1
  %v346 = vpop.permute.xlu0 %345
  %v347 = vrot.slane %v344, 4
  %v348 = vrot.slane %v346, 4
  %v349 = vsel %vm272, %v347, %v344
  %v350 = vsel %vm65, %v347, %v348
  %v351 = vsel %vm272, %v350, %v346
  %v354 = vmul.f32 %v35, %v349
  %v355 = vmul.f32 %v36, %v351
  %v358 = vcombine.low %v354, %v354
  %v359 = vcombine.low %v355, %v355
  %360 = vrot.lane.b32.xlu0 %v358, 127
  %v361 = vpop.permute.xlu0 %360
  %362 = vrot.lane.b32.xlu0 %v354, 127
  %v363 = vpop.permute.xlu0 %362
  %364 = vrot.lane.b32.xlu0 %v359, 127
  %v365 = vpop.permute.xlu0 %364
  %366 = vrot.lane.b32.xlu0 %v355, 127
  %v367 = vpop.permute.xlu0 %366
  %v368 = vsel %vm253, %v361, %v363
  %v369 = vsel %vm253, %v363, %v365
  %v370 = vsel %vm253, %v365, %v367
  %375 = vst [vmem:[#allocation2 + $0x40] sm:$0xf0] %v368
  %376 = vst [vmem:[#allocation2 + $0x48] sm:$0xf0] %v369
  %377 = vst [vmem:[#allocation2 + $0x50] sm:$0xf0] %v370
  %vm378 = vcmask 1039364
  %379 = vst.msk [vmem:[#allocation2 + $0x58] sm:$0xf0] %vm378, %v367
  %vm380 = vcmask 1044360
  %381 = vst.msk [vmem:[#allocation2 + $0x78] sm:$0xf] %vm380, 0.0
  %s382 = scalar_lea.vmem %s1, 6
  %v383 = vld [vmem:[%s382] ss:$8 sm:$0xf]
  %v385 = vlaneseq
  %v386 = vshrl.u32 %v385, 7
  %v387 = vsub.s32 0, %v386
  %v388 = vrot.slane %v383, %v387
  %v389 = vlaneseq
  %v390 = vshrl.u32 %v389, 7
  %v391 = vsub.s32 1, %v390
  %v392 = vrot.slane %v383, %v391
  %v393 = vlaneseq
  %v394 = vshrl.u32 %v393, 7
  %v395 = vsub.s32 2, %v394
  %v396 = vrot.slane %v383, %v395
  %v397 = vlaneseq
  %v398 = vshrl.u32 %v397, 7
  %v399 = vsub.s32 3, %v398
  %v400 = vrot.slane %v383, %v399
  %v401 = vcombine.low %v388, %v392
  %v402 = vcombine.low %v396, %v400
  %403 = vrot.lane.b32.xlu0 %v401, 15
  %v404 = vpop.permute.xlu0 %403
  %405 = vrot.lane.b32.xlu0 %v402, 15
  %v406 = vpop.permute.xlu0 %405
  %v407 = vrot.slane %v404, 4
  %v408 = vrot.slane %v406, 4
  %v409 = vsel %vm210, %v407, %v404
  %v410 = vsel %vm65, %v407, %v408
  %v411 = vsel %vm210, %v410, %v406
  %v414 = vmul.f32 %v35, %v409
  %v415 = vmul.f32 %v36, %v411
  %v418 = vcombine.high %v414, %v414
  %v419 = vcombine.high %v415, %v415
  %420 = vrot.lane.b32.xlu0 %v414, 113
  %v421 = vpop.permute.xlu0 %420
  %422 = vrot.lane.b32.xlu0 %v418, 113
  %v423 = vpop.permute.xlu0 %422
  %424 = vrot.lane.b32.xlu0 %v415, 113
  %v425 = vpop.permute.xlu0 %424
  %426 = vrot.lane.b32.xlu0 %v419, 113
  %v427 = vpop.permute.xlu0 %426
  %v428 = vsel %vm191, %v421, %v423
  %v429 = vsel %vm191, %v423, %v425
  %v430 = vsel %vm191, %v425, %v427
  %435 = vst [vmem:[#allocation2 + $0x60] sm:$0xf] %v428
  %436 = vst [vmem:[#allocation2 + $0x68] sm:$0xf] %v429
  %437 = vst [vmem:[#allocation2 + $0x70] sm:$0xf] %v430
  %vm438 = vcmask 920576
  %439 = vst.msk [vmem:[#allocation2 + $0x78] sm:$0xf] %vm438, %v427
  %vm440 = vcmask 1048452
  %441 = vst.msk [vmem:[#allocation2 + $0x78] sm:$0xf0] %vm440, 0.0
  %s442 = scalar_lea.vmem %s1, 7
  %v443 = vld [vmem:[%s442] ss:$8 sm:$0xf]
  %v445 = vlaneseq
  %v446 = vshrl.u32 %v445, 7
  %v447 = vsub.s32 0, %v446
  %v448 = vrot.slane %v443, %v447
  %v449 = vlaneseq
  %v450 = vshrl.u32 %v449, 7
  %v451 = vsub.s32 1, %v450
  %v452 = vrot.slane %v443, %v451
  %v453 = vlaneseq
  %v454 = vshrl.u32 %v453, 7
  %v455 = vsub.s32 2, %v454
  %v456 = vrot.slane %v443, %v455
  %v457 = vlaneseq
  %v458 = vshrl.u32 %v457, 7
  %v459 = vsub.s32 3, %v458
  %v460 = vrot.slane %v443, %v459
  %v461 = vcombine.low %v448, %v452
  %v462 = vcombine.low %v456, %v460
  %463 = vrot.lane.b32.xlu0 %v461, 16
  %v464 = vpop.permute.xlu0 %463
  %465 = vrot.lane.b32.xlu0 %v462, 16
  %v466 = vpop.permute.xlu0 %465
  %v467 = vrot.slane %v464, 4
  %v468 = vrot.slane %v466, 4
  %v469 = vsel %vm148, %v467, %v464
  %v470 = vsel %vm65, %v467, %v468
  %v471 = vsel %vm148, %v470, %v466
  %v474 = vmul.f32 %v35, %v469
  %v475 = vmul.f32 %v36, %v471
  %v478 = vcombine.low %v474, %v474
  %v479 = vcombine.low %v475, %v475
  %480 = vrot.lane.b32.xlu0 %v478, 112
  %v481 = vpop.permute.xlu0 %480
  %482 = vrot.lane.b32.xlu0 %v474, 112
  %v483 = vpop.permute.xlu0 %482
  %484 = vrot.lane.b32.xlu0 %v479, 112
  %v485 = vpop.permute.xlu0 %484
  %486 = vrot.lane.b32.xlu0 %v475, 112
  %v487 = vpop.permute.xlu0 %486
  %v488 = vsel %vm129, %v481, %v483
  %v489 = vsel %vm129, %v483, %v485
  %v490 = vsel %vm129, %v485, %v487
  %495 = vst [vmem:[#allocation2 + $0x60] sm:$0xf0] %v488
  %496 = vst [vmem:[#allocation2 + $0x68] sm:$0xf0] %v489
  %497 = vst [vmem:[#allocation2 + $0x70] sm:$0xf0] %v490
  %vm498 = vcmask 916484
  %499 = vst.msk [vmem:[#allocation2 + $0x78] sm:$0xf0] %vm498, %v487
  %vm500 = vcmask 1044344
  %501 = vst.msk [vmem:[#allocation2 + $0x98] sm:$0xf] %vm500, 0.0
  %s502 = scalar_lea.vmem %s1, 32
  %v503 = vld [vmem:[%s502] ss:$8 sm:$0xf]
  %v505 = vlaneseq
  %v506 = vshrl.u32 %v505, 7
  %v507 = vsub.s32 0, %v506
  %v508 = vrot.slane %v503, %v507
  %v509 = vlaneseq
  %v510 = vshrl.u32 %v509, 7
  %v511 = vsub.s32 1, %v510
  %v512 = vrot.slane %v503, %v511
  %v513 = vlaneseq
  %v514 = vshrl.u32 %v513, 7
  %v515 = vsub.s32 2, %v514
  %v516 = vrot.slane %v503, %v515
  %v517 = vlaneseq
  %v518 = vshrl.u32 %v517, 7
  %v519 = vsub.s32 3, %v518
  %v520 = vrot.slane %v503, %v519
  %v521 = vcombine.low %v508, %v512
  %v522 = vcombine.low %v516, %v520
  %523 = vrot.lane.b32.xlu0 %v521, 17
  %v524 = vpop.permute.xlu0 %523
  %525 = vrot.lane.b32.xlu0 %v522, 17
  %v526 = vpop.permute.xlu0 %525
  %v527 = vrot.slane %v524, 4
  %v528 = vrot.slane %v526, 4
  %v529 = vsel %vm86, %v527, %v524
  %v530 = vsel %vm65, %v527, %v528
  %v531 = vsel %vm86, %v530, %v526
  %v534 = vmul.f32 %v35, %v529
  %v535 = vmul.f32 %v36, %v531
  %v538 = vcombine.high %v534, %v534
  %v539 = vcombine.high %v535, %v535
  %540 = vrot.lane.b32.xlu0 %v534, 111
  %v541 = vpop.permute.xlu0 %540
  %542 = vrot.lane.b32.xlu0 %v538, 111
  %v543 = vpop.permute.xlu0 %542
  %544 = vrot.lane.b32.xlu0 %v535, 111
  %v545 = vpop.permute.xlu0 %544
  %546 = vrot.lane.b32.xlu0 %v539, 111
  %v547 = vpop.permute.xlu0 %546
  %v548 = vsel %vm67, %v541, %v543
  %v549 = vsel %vm67, %v543, %v545
  %v550 = vsel %vm67, %v545, %v547
  %555 = vst [vmem:[#allocation2 + $0x80] sm:$0xf] %v548
  %556 = vst [vmem:[#allocation2 + $0x88] sm:$0xf] %v549
  %557 = vst [vmem:[#allocation2 + $0x90] sm:$0xf] %v550
  %vm558 = vcmask 904192
  %559 = vst.msk [vmem:[#allocation2 + $0x98] sm:$0xf] %vm558, %v547
  %v560 = vld [vmem:[%s2] sm:$0xf]
  %v561 = vld [vmem:[#allocation2] sm:$0xff]
  %v562 = vld [vmem:[#allocation2 + $0x8] sm:$0xff]
  %v563 = vld [vmem:[#allocation2 + $0x10] sm:$0xff]
  %v564 = vld [vmem:[#allocation2 + $0x18] sm:$0xff]
  %v565 = vld [vmem:[#allocation2 + $0x20] sm:$0xff]
  %v566 = vld [vmem:[#allocation2 + $0x28] sm:$0xff]
  %v567 = vld [vmem:[#allocation2 + $0x30] sm:$0xff]
  %v568 = vld [vmem:[#allocation2 + $0x38] sm:$0xff]
  %v569 = vld [vmem:[#allocation2 + $0x40] sm:$0xff]
  %v570 = vld [vmem:[#allocation2 + $0x48] sm:$0xff]
  %v571 = vld [vmem:[#allocation2 + $0x50] sm:$0xff]
  %v572 = vld [vmem:[#allocation2 + $0x58] sm:$0xff]
  %v573 = vld [vmem:[#allocation2 + $0x60] sm:$0xff]
  %v574 = vld [vmem:[#allocation2 + $0x68] sm:$0xff]
  %v575 = vld [vmem:[#allocation2 + $0x70] sm:$0xff]
  %v576 = vld [vmem:[#allocation2 + $0x78] sm:$0xff]
  %v577 = vld [vmem:[#allocation2 + $0x80] sm:$0xf]
  %v578 = vld [vmem:[#allocation2 + $0x88] sm:$0xf]
  %v579 = vld [vmem:[#allocation2 + $0x90] sm:$0xf]
  %v580 = vld [vmem:[#allocation2 + $0x98] sm:$0xf]
  %v581 = vld [vmem:[%s3] sm:$0xf]
  %583 = vset.pattern.permute.xlu0 0
  %584 = vperm.xlu0 %583, %v581
  %v585 = vpop.permute.xlu0 %584
  %vm587 = vcmask 293888
  %v589 = vsel %vm587, %v560, 0
  %v592 = vsel %vm65, %v577, 0
  %v595 = vsel %vm65, %v578, 0
  %v598 = vsel %vm65, %v579, 0
  %v601 = vsel %vm65, %v580, 0
  %603 = vmatprep.subr.mxu0 %v562
  %604 = vmatpush1.msra.mxu0 %v561
  %605 = vmatprep.subr.mxu0 %v566
  %606 = vmatpush1.msra.mxu0 %v565
  %607 = vmatprep.subr.mxu0 %v570
  %608 = vmatpush1.msra.mxu0 %v569
  %609 = vmatprep.subr.mxu0 %v574
  %610 = vmatpush1.msra.mxu0 %v573
  %611 = vmatprep.subr.mxu0 %v595
  %612 = vmatpush1.msra.mxu0 %v592
  %613 = vmatprep.subr.mxu0 0.0
  %614 = vmatpush1.msra.mxu0 0.0
  %615 = vmatprep.subr.mxu0 0.0
  %616 = vmatpush1.msra.mxu0 0.0
  %617 = vmatprep.subr.mxu0 0.0
  %618 = vmatpush1.msra.mxu0 0.0
  %619 = vmatprep.subr.mxu0 0.0
  %620 = vmatpush1.msra.mxu0 0.0
  %621 = vmatprep.subr.mxu0 0.0
  %622 = vmatpush1.msra.mxu0 0.0
  %623 = vmatprep.subr.mxu0 0.0
  %624 = vmatpush1.msra.mxu0 0.0
  %625 = vmatprep.subr.mxu0 0.0
  %626 = vmatpush1.msra.mxu0 0.0
  %627 = vmatprep.subr.mxu0 0.0
  %628 = vmatpush1.msra.mxu0 0.0
  %629 = vmatprep.subr.mxu0 0.0
  %630 = vmatpush1.msra.mxu0 0.0
  %631 = vmatprep.subr.mxu0 0.0
  %632 = vmatpush1.msra.mxu0 0.0
  %633 = vmatprep.subr.mxu0 0.0
  %634 = vmatpush1.msra.mxu0 0.0
  %635 = vmatprep.subr.mxu0 0.0
  %636 = vmatpush1.msra.mxu0 0.0
  %637 = vmatprep.subr.mxu0 0.0
  %638 = vmatpush1.msra.mxu0 0.0
  %639 = vmatprep.subr.mxu0 0.0
  %640 = vmatpush1.msra.mxu0 0.0
  %641 = vmatprep.subr.mxu0 0.0
  %642 = vmatpush1.msra.mxu0 0.0
  %643 = vmatprep.subr.mxu0 0.0
  %644 = vmatpush1.msra.mxu0 0.0
  %645 = vmatprep.subr.mxu0 0.0
  %646 = vmatpush1.msra.mxu0 0.0
  %647 = vmatprep.subr.mxu0 0.0
  %648 = vmatpush1.msra.mxu0 0.0
  %649 = vmatprep.subr.mxu0 0.0
  %650 = vmatpush1.msra.mxu0 0.0
  %651 = vmatprep.subr.mxu0 0.0
  %652 = vmatpush1.msra.mxu0 0.0
  %653 = vmatprep.subr.mxu0 0.0
  %654 = vmatpush1.msra.mxu0 0.0
  %655 = vmatprep.subr.mxu0 0.0
  %656 = vmatpush1.msra.mxu0 0.0
  %657 = vmatprep.subr.mxu0 0.0
  %658 = vmatpush1.msra.mxu0 0.0
  %659 = vmatprep.subr.mxu0 0.0
  %660 = vmatpush1.msra.mxu0 0.0
  %661 = vmatprep.subr.mxu0 0.0
  %662 = vmatpush1.msra.mxu0 0.0
  %663 = vmatprep.subr.mxu0 0.0
  %664 = vmatpush1.msra.mxu0 0.0
  %665 = vmatprep.subr.mxu0 0.0
  %666 = vmatpush1.msra.mxu0 0.0
  %667 = vmatprep.mubr.f32.mxu0 0.0
  %668 = vmatmul.mubr.f32.gmra.mrb[0].mxu0 %v589
  %v669 = vpop.f32.mrb[0].mxu0
  %v670 = vadd.f32 %v585, %v669
  %v671 = vpop.f32.mrb[0].mxu0
  %v672 = vadd.f32 %v585, %v671
  %673 = vdwg.mxu0
  %674 = vmatprep.subr.mxu0 %v564
  %675 = vmatpush1.msra.mxu0 %v563
  %676 = vmatprep.subr.mxu0 %v568
  %677 = vmatpush1.msra.mxu0 %v567
  %678 = vmatprep.subr.mxu0 %v572
  %679 = vmatpush1.msra.mxu0 %v571
  %680 = vmatprep.subr.mxu0 %v576
  %681 = vmatpush1.msra.mxu0 %v575
  %682 = vmatprep.subr.mxu0 %v601
  %683 = vmatpush1.msra.mxu0 %v598
  %684 = vmatprep.subr.mxu0 0.0
  %685 = vmatpush1.msra.mxu0 0.0
  %686 = vmatprep.subr.mxu0 0.0
  %687 = vmatpush1.msra.mxu0 0.0
  %688 = vmatprep.subr.mxu0 0.0
  %689 = vmatpush1.msra.mxu0 0.0
  %690 = vmatprep.subr.mxu0 0.0
  %691 = vmatpush1.msra.mxu0 0.0
  %692 = vmatprep.subr.mxu0 0.0
  %693 = vmatpush1.msra.mxu0 0.0
  %694 = vmatprep.subr.mxu0 0.0
  %695 = vmatpush1.msra.mxu0 0.0
  %696 = vmatprep.subr.mxu0 0.0
  %697 = vmatpush1.msra.mxu0 0.0
  %698 = vmatprep.subr.mxu0 0.0
  %699 = vmatpush1.msra.mxu0 0.0
  %700 = vmatprep.subr.mxu0 0.0
  %701 = vmatpush1.msra.mxu0 0.0
  %702 = vmatprep.subr.mxu0 0.0
  %703 = vmatpush1.msra.mxu0 0.0
  %704 = vmatprep.subr.mxu0 0.0
  %705 = vmatpush1.msra.mxu0 0.0
  %706 = vmatprep.subr.mxu0 0.0
  %707 = vmatpush1.msra.mxu0 0.0
  %708 = vmatprep.subr.mxu0 0.0
  %709 = vmatpush1.msra.mxu0 0.0
  %710 = vmatprep.subr.mxu0 0.0
  %711 = vmatpush1.msra.mxu0 0.0
  %712 = vmatprep.subr.mxu0 0.0
  %713 = vmatpush1.msra.mxu0 0.0
  %714 = vmatprep.subr.mxu0 0.0
  %715 = vmatpush1.msra.mxu0 0.0
  %716 = vmatprep.subr.mxu0 0.0
  %717 = vmatpush1.msra.mxu0 0.0
  %718 = vmatprep.subr.mxu0 0.0
  %719 = vmatpush1.msra.mxu0 0.0
  %720 = vmatprep.subr.mxu0 0.0
  %721 = vmatpush1.msra.mxu0 0.0
  %722 = vmatprep.subr.mxu0 0.0
  %723 = vmatpush1.msra.mxu0 0.0
  %724 = vmatprep.subr.mxu0 0.0
  %725 = vmatpush1.msra.mxu0 0.0
  %726 = vmatprep.subr.mxu0 0.0
  %727 = vmatpush1.msra.mxu0 0.0
  %728 = vmatprep.subr.mxu0 0.0
  %729 = vmatpush1.msra.mxu0 0.0
  %730 = vmatprep.subr.mxu0 0.0
  %731 = vmatpush1.msra.mxu0 0.0
  %732 = vmatprep.subr.mxu0 0.0
  %733 = vmatpush1.msra.mxu0 0.0
  %734 = vmatprep.subr.mxu0 0.0
  %735 = vmatpush1.msra.mxu0 0.0
  %736 = vmatprep.subr.mxu0 0.0
  %737 = vmatpush1.msra.mxu0 0.0
  %738 = vmatprep.mubr.f32.mxu0 0.0
  %739 = vmatmul.mubr.f32.gmra.mrb[0].mxu0 %v589
  %v740 = vpop.f32.mrb[0].mxu0
  %v741 = vadd.f32 %v585, %v740
  %v742 = vpop.f32.mrb[0].mxu0
  %v743 = vadd.f32 %v585, %v742
  %744 = vdwg.mxu0
  %v745 = vsel %vm65, %v670, 0.0
  %v746 = vsel %vm65, %v672, 0.0
  %v747 = vadd.f32 %v745, %v746
  %v748 = vsel %vm65, %v741, 0.0
  %v749 = vadd.f32 %v747, %v748
  %v750 = vsel %vm65, %v743, 0.0
  %v751 = vadd.f32 %v749, %v750
  %752 = vadd.xlane.f32.xlu0 %v751
  %v753 = vpop.xlane.xlu0 %752
  %v754 = vmul.f32 %v753, 0.001953125
  %v755 = vmul.f32 %v670, %v670
  %v756 = vmul.f32 %v672, %v672
  %v757 = vmul.f32 %v741, %v741
  %v758 = vmul.f32 %v743, %v743
  %v759 = vsel %vm65, %v755, 0.0
  %v760 = vsel %vm65, %v756, 0.0
  %v761 = vadd.f32 %v759, %v760
  %v762 = vsel %vm65, %v757, 0.0
  %v763 = vadd.f32 %v761, %v762
  %v764 = vsel %vm65, %v758, 0.0
  %v765 = vadd.f32 %v763, %v764
  %766 = vadd.xlane.f32.xlu0 %v765
  %v767 = vpop.xlane.xlu0 %766
  %v768 = vmul.f32 %v767, 0.001953125
  %v769 = vmul.f32 %v754, %v754
  %v770 = vsub.f32 %v768, %v769
  %v771 = vsub.f32 %v670, %v754
  %v772 = vsub.f32 %v672, %v754
  %v773 = vsub.f32 %v741, %v754
  %v774 = vsub.f32 %v743, %v754
  %v775 = vadd.f32 %v770, 1e-05
  %v776 = vrsqrt.pop %v775
  %v777 = vmul.f32 %v771, %v776
  %v778 = vmul.f32 %v772, %v776
  %v779 = vmul.f32 %v773, %v776
  %v780 = vmul.f32 %v774, %v776
  %v781 = vld [vmem:[%s4] sm:$0xf]
  %783 = vset.pattern.permute.xlu0 0
  %784 = vperm.xlu0 %783, %v781
  %v785 = vpop.permute.xlu0 %784
  %v787 = vmul.f32 %v777, %v785
  %v788 = vmul.f32 %v778, %v785
  %v789 = vmul.f32 %v779, %v785
  %v790 = vmul.f32 %v780, %v785
  %v791 = vld [vmem:[%s5] sm:$0xf]
  %793 = vset.pattern.permute.xlu0 0
  %794 = vperm.xlu0 %793, %v791
  %v795 = vpop.permute.xlu0 %794
  %v797 = vadd.f32 %v787, %v795
  %v798 = vadd.f32 %v788, %v795
  %v799 = vadd.f32 %v789, %v795
  %v800 = vadd.f32 %v790, %v795
  %v801 = vmax.f32 %v797, 0.0
  %v802 = vmax.f32 %v798, 0.0
  %v803 = vmax.f32 %v799, 0.0
  %v804 = vmax.f32 %v800, 0.0
  %805 = vst.msk [vmem:[#allocation2] sm:$0xf] %vm37, 0.0
  %v806 = vld [vmem:[%s1] ss:$8 sm:$0xf]
  %v808 = vlaneseq
  %v809 = vshrl.u32 %v808, 7
  %v810 = vsub.s32 0, %v809
  %v811 = vrot.slane %v806, %v810
  %v812 = vlaneseq
  %v813 = vshrl.u32 %v812, 7
  %v814 = vsub.s32 1, %v813
  %v815 = vrot.slane %v806, %v814
  %v816 = vlaneseq
  %v817 = vshrl.u32 %v816, 7
  %v818 = vsub.s32 2, %v817
  %v819 = vrot.slane %v806, %v818
  %v820 = vlaneseq
  %v821 = vshrl.u32 %v820, 7
  %v822 = vsub.s32 3, %v821
  %v823 = vrot.slane %v806, %v822
  %824 = vrot.lane.b32.xlu0 %v811, 111
  %v825 = vpop.permute.xlu0 %824
  %826 = vrot.lane.b32.xlu0 %v815, 111
  %v827 = vpop.permute.xlu0 %826
  %828 = vrot.lane.b32.xlu0 %v819, 111
  %v829 = vpop.permute.xlu0 %828
  %830 = vrot.lane.b32.xlu0 %v823, 111
  %v831 = vpop.permute.xlu0 %830
  %v832 = vsel %vm67, %v825, %v827
  %v833 = vsel %vm67, %v827, %v829
  %v834 = vsel %vm67, %v829, %v831
  %v839 = vmul.f32 %v801, %v832
  %v840 = vmul.f32 %v802, %v833
  %v841 = vmul.f32 %v803, %v834
  %v842 = vmul.f32 %v804, %v831
  %847 = vrot.lane.b32.xlu0 %v839, 17
  %v848 = vpop.permute.xlu0 %847
  %849 = vrot.lane.b32.xlu0 %v840, 17
  %v850 = vpop.permute.xlu0 %849
  %851 = vrot.lane.b32.xlu0 %v841, 17
  %v852 = vpop.permute.xlu0 %851
  %853 = vrot.lane.b32.xlu0 %v842, 17
  %v854 = vpop.permute.xlu0 %853
  %v855 = vsel %vm86, %v848, %v850
  %v856 = vsel %vm86, %v850, %v852
  %v857 = vsel %vm86, %v852, %v854
  %862 = vst.msk [vmem:[#allocation2] sm:$0xf] %vm94, %v848
  %863 = vst [vmem:[#allocation2 + $0x8] sm:$0xf] %v855
  %864 = vst [vmem:[#allocation2 + $0x10] sm:$0xf] %v856
  %865 = vst [vmem:[#allocation2 + $0x18] sm:$0xf] %v857
  %866 = vst.msk [vmem:[#allocation2] sm:$0xf0] %vm99, 0.0
  %v867 = vld [vmem:[%s101] ss:$8 sm:$0xf]
  %v869 = vlaneseq
  %v870 = vshrl.u32 %v869, 7
  %v871 = vsub.s32 0, %v870
  %v872 = vrot.slane %v867, %v871
  %v873 = vlaneseq
  %v874 = vshrl.u32 %v873, 7
  %v875 = vsub.s32 1, %v874
  %v876 = vrot.slane %v867, %v875
  %v877 = vlaneseq
  %v878 = vshrl.u32 %v877, 7
  %v879 = vsub.s32 2, %v878
  %v880 = vrot.slane %v867, %v879
  %v881 = vlaneseq
  %v882 = vshrl.u32 %v881, 7
  %v883 = vsub.s32 3, %v882
  %v884 = vrot.slane %v867, %v883
  %885 = vrot.lane.b32.xlu0 %v872, 112
  %v886 = vpop.permute.xlu0 %885
  %887 = vrot.lane.b32.xlu0 %v876, 112
  %v888 = vpop.permute.xlu0 %887
  %889 = vrot.lane.b32.xlu0 %v880, 112
  %v890 = vpop.permute.xlu0 %889
  %891 = vrot.lane.b32.xlu0 %v884, 112
  %v892 = vpop.permute.xlu0 %891
  %v893 = vsel %vm129, %v886, %v888
  %v894 = vsel %vm129, %v888, %v890
  %v895 = vsel %vm129, %v890, %v892
  %v900 = vmul.f32 %v801, %v893
  %v901 = vmul.f32 %v802, %v894
  %v902 = vmul.f32 %v803, %v895
  %v903 = vmul.f32 %v804, %v892
  %v908 = vrot.slane %v900, 4
  %v909 = vrot.slane %v901, 4
  %v910 = vrot.slane %v902, 4
  %v911 = vrot.slane %v903, 4
  %912 = vrot.lane.b32.xlu0 %v908, 16
  %v913 = vpop.permute.xlu0 %912
  %914 = vrot.lane.b32.xlu0 %v909, 16
  %v915 = vpop.permute.xlu0 %914
  %916 = vrot.lane.b32.xlu0 %v910, 16
  %v917 = vpop.permute.xlu0 %916
  %918 = vrot.lane.b32.xlu0 %v911, 16
  %v919 = vpop.permute.xlu0 %918
  %v920 = vsel %vm148, %v913, %v915
  %v921 = vsel %vm148, %v915, %v917
  %v922 = vsel %vm148, %v917, %v919
  %927 = vst.msk [vmem:[#allocation2] sm:$0xf0] %vm156, %v913
  %928 = vst [vmem:[#allocation2 + $0x8] sm:$0xf0] %v920
  %929 = vst [vmem:[#allocation2 + $0x10] sm:$0xf0] %v921
  %930 = vst [vmem:[#allocation2 + $0x18] sm:$0xf0] %v922
  %931 = vst.msk [vmem:[#allocation2 + $0x20] sm:$0xf] %vm161, 0.0
  %v932 = vld [vmem:[%s163] ss:$8 sm:$0xf]
  %v934 = vlaneseq
  %v935 = vshrl.u32 %v934, 7
  %v936 = vsub.s32 0, %v935
  %v937 = vrot.slane %v932, %v936
  %v938 = vlaneseq
  %v939 = vshrl.u32 %v938, 7
  %v940 = vsub.s32 1, %v939
  %v941 = vrot.slane %v932, %v940
  %v942 = vlaneseq
  %v943 = vshrl.u32 %v942, 7
  %v944 = vsub.s32 2, %v943
  %v945 = vrot.slane %v932, %v944
  %v946 = vlaneseq
  %v947 = vshrl.u32 %v946, 7
  %v948 = vsub.s32 3, %v947
  %v949 = vrot.slane %v932, %v948
  %950 = vrot.lane.b32.xlu0 %v937, 113
  %v951 = vpop.permute.xlu0 %950
  %952 = vrot.lane.b32.xlu0 %v941, 113
  %v953 = vpop.permute.xlu0 %952
  %954 = vrot.lane.b32.xlu0 %v945, 113
  %v955 = vpop.permute.xlu0 %954
  %956 = vrot.lane.b32.xlu0 %v949, 113
  %v957 = vpop.permute.xlu0 %956
  %v958 = vsel %vm191, %v951, %v953
  %v959 = vsel %vm191, %v953, %v955
  %v960 = vsel %vm191, %v955, %v957
  %v965 = vmul.f32 %v801, %v958
  %v966 = vmul.f32 %v802, %v959
  %v967 = vmul.f32 %v803, %v960
  %v968 = vmul.f32 %v804, %v957
  %973 = vrot.lane.b32.xlu0 %v965, 15
  %v974 = vpop.permute.xlu0 %973
  %975 = vrot.lane.b32.xlu0 %v966, 15
  %v976 = vpop.permute.xlu0 %975
  %977 = vrot.lane.b32.xlu0 %v967, 15
  %v978 = vpop.permute.xlu0 %977
  %979 = vrot.lane.b32.xlu0 %v968, 15
  %v980 = vpop.permute.xlu0 %979
  %v981 = vsel %vm210, %v974, %v976
  %v982 = vsel %vm210, %v976, %v978
  %v983 = vsel %vm210, %v978, %v980
  %988 = vst.msk [vmem:[#allocation2 + $0x20] sm:$0xf] %vm218, %v974
  %989 = vst [vmem:[#allocation2 + $0x28] sm:$0xf] %v981
  %990 = vst [vmem:[#allocation2 + $0x30] sm:$0xf] %v982
  %991 = vst [vmem:[#allocation2 + $0x38] sm:$0xf] %v983
  %992 = vst.msk [vmem:[#allocation2 + $0x20] sm:$0xf0] %vm223, 0.0
  %v993 = vld [vmem:[%s225] ss:$8 sm:$0xf]
  %v995 = vlaneseq
  %v996 = vshrl.u32 %v995, 7
  %v997 = vsub.s32 0, %v996
  %v998 = vrot.slane %v993, %v997
  %v999 = vlaneseq
  %v1000 = vshrl.u32 %v999, 7
  %v1001 = vsub.s32 1, %v1000
  %v1002 = vrot.slane %v993, %v1001
  %v1003 = vlaneseq
  %v1004 = vshrl.u32 %v1003, 7
  %v1005 = vsub.s32 2, %v1004
  %v1006 = vrot.slane %v993, %v1005
  %v1007 = vlaneseq
  %v1008 = vshrl.u32 %v1007, 7
  %v1009 = vsub.s32 3, %v1008
  %v1010 = vrot.slane %v993, %v1009
  %1011 = vrot.lane.b32.xlu0 %v998, 127
  %v1012 = vpop.permute.xlu0 %1011
  %1013 = vrot.lane.b32.xlu0 %v1002, 127
  %v1014 = vpop.permute.xlu0 %1013
  %1015 = vrot.lane.b32.xlu0 %v1006, 127
  %v1016 = vpop.permute.xlu0 %1015
  %1017 = vrot.lane.b32.xlu0 %v1010, 127
  %v1018 = vpop.permute.xlu0 %1017
  %v1019 = vsel %vm253, %v1012, %v1014
  %v1020 = vsel %vm253, %v1014, %v1016
  %v1021 = vsel %vm253, %v1016, %v1018
  %v1026 = vmul.f32 %v801, %v1019
  %v1027 = vmul.f32 %v802, %v1020
  %v1028 = vmul.f32 %v803, %v1021
  %v1029 = vmul.f32 %v804, %v1018
  %v1034 = vrot.slane %v1026, 4
  %v1035 = vrot.slane %v1027, 4
  %v1036 = vrot.slane %v1028, 4
  %v1037 = vrot.slane %v1029, 4
  %1038 = vrot.lane.b32.xlu0 %v1034, 1
  %v1039 = vpop.permute.xlu0 %1038
  %1040 = vrot.lane.b32.xlu0 %v1035, 1
  %v1041 = vpop.permute.xlu0 %1040
  %1042 = vrot.lane.b32.xlu0 %v1036, 1
  %v1043 = vpop.permute.xlu0 %1042
  %1044 = vrot.lane.b32.xlu0 %v1037, 1
  %v1045 = vpop.permute.xlu0 %1044
  %v1046 = vsel %vm272, %v1039, %v1041
  %v1047 = vsel %vm272, %v1041, %v1043
  %v1048 = vsel %vm272, %v1043, %v1045
  %1053 = vst.msk [vmem:[#allocation2 + $0x20] sm:$0xf0] %vm280, %v1039
  %1054 = vst [vmem:[#allocation2 + $0x28] sm:$0xf0] %v1046
  %1055 = vst [vmem:[#allocation2 + $0x30] sm:$0xf0] %v1047
  %1056 = vst [vmem:[#allocation2 + $0x38] sm:$0xf0] %v1048
  %v1057 = vld [vmem:[%s285] ss:$8 sm:$0xf]
  %v1059 = vlaneseq
  %v1060 = vshrl.u32 %v1059, 7
  %v1061 = vsub.s32 0, %v1060
  %v1062 = vrot.slane %v1057, %v1061
  %v1063 = vlaneseq
  %v1064 = vshrl.u32 %v1063, 7
  %v1065 = vsub.s32 1, %v1064
  %v1066 = vrot.slane %v1057, %v1065
  %v1067 = vlaneseq
  %v1068 = vshrl.u32 %v1067, 7
  %v1069 = vsub.s32 2, %v1068
  %v1070 = vrot.slane %v1057, %v1069
  %v1071 = vlaneseq
  %v1072 = vshrl.u32 %v1071, 7
  %v1073 = vsub.s32 3, %v1072
  %v1074 = vrot.slane %v1057, %v1073
  %v1079 = vmul.f32 %v801, %v1062
  %v1080 = vmul.f32 %v802, %v1066
  %v1081 = vmul.f32 %v803, %v1070
  %v1082 = vmul.f32 %v804, %v1074
  %1083 = vst [vmem:[#allocation2 + $0x40] sm:$0xf] %v1079
  %1084 = vst [vmem:[#allocation2 + $0x48] sm:$0xf] %v1080
  %1085 = vst [vmem:[#allocation2 + $0x50] sm:$0xf] %v1081
  %1086 = vst [vmem:[#allocation2 + $0x58] sm:$0xf] %v1082
  %1087 = vst.msk [vmem:[#allocation2 + $0x58] sm:$0xf0] %vm320, 0.0
  %v1088 = vld [vmem:[%s322] ss:$8 sm:$0xf]
  %v1090 = vlaneseq
  %v1091 = vshrl.u32 %v1090, 7
  %v1092 = vsub.s32 0, %v1091
  %v1093 = vrot.slane %v1088, %v1092
  %v1094 = vlaneseq
  %v1095 = vshrl.u32 %v1094, 7
  %v1096 = vsub.s32 1, %v1095
  %v1097 = vrot.slane %v1088, %v1096
  %v1098 = vlaneseq
  %v1099 = vshrl.u32 %v1098, 7
  %v1100 = vsub.s32 2, %v1099
  %v1101 = vrot.slane %v1088, %v1100
  %v1102 = vlaneseq
  %v1103 = vshrl.u32 %v1102, 7
  %v1104 = vsub.s32 3, %v1103
  %v1105 = vrot.slane %v1088, %v1104
  %1106 = vrot.lane.b32.xlu0 %v1093, 1
  %v1107 = vpop.permute.xlu0 %1106
  %1108 = vrot.lane.b32.xlu0 %v1097, 1
  %v1109 = vpop.permute.xlu0 %1108
  %1110 = vrot.lane.b32.xlu0 %v1101, 1
  %v1111 = vpop.permute.xlu0 %1110
  %1112 = vrot.lane.b32.xlu0 %v1105, 1
  %v1113 = vpop.permute.xlu0 %1112
  %v1114 = vsel %vm272, %v1107, %v1109
  %v1115 = vsel %vm272, %v1109, %v1111
  %v1116 = vsel %vm272, %v1111, %v1113
  %v1121 = vmul.f32 %v801, %v1107
  %v1122 = vmul.f32 %v802, %v1114
  %v1123 = vmul.f32 %v803, %v1115
  %v1124 = vmul.f32 %v804, %v1116
  %v1129 = vrot.slane %v1121, 4
  %v1130 = vrot.slane %v1122, 4
  %v1131 = vrot.slane %v1123, 4
  %v1132 = vrot.slane %v1124, 4
  %1133 = vrot.lane.b32.xlu0 %v1129, 127
  %v1134 = vpop.permute.xlu0 %1133
  %1135 = vrot.lane.b32.xlu0 %v1130, 127
  %v1136 = vpop.permute.xlu0 %1135
  %1137 = vrot.lane.b32.xlu0 %v1131, 127
  %v1138 = vpop.permute.xlu0 %1137
  %1139 = vrot.lane.b32.xlu0 %v1132, 127
  %v1140 = vpop.permute.xlu0 %1139
  %v1141 = vsel %vm253, %v1134, %v1136
  %v1142 = vsel %vm253, %v1136, %v1138
  %v1143 = vsel %vm253, %v1138, %v1140
  %1148 = vst [vmem:[#allocation2 + $0x40] sm:$0xf0] %v1141
  %1149 = vst [vmem:[#allocation2 + $0x48] sm:$0xf0] %v1142
  %1150 = vst [vmem:[#allocation2 + $0x50] sm:$0xf0] %v1143
  %1151 = vst.msk [vmem:[#allocation2 + $0x58] sm:$0xf0] %vm378, %v1140
  %1152 = vst.msk [vmem:[#allocation2 + $0x78] sm:$0xf] %vm380, 0.0
  %v1153 = vld [vmem:[%s382] ss:$8 sm:$0xf]
  %v1155 = vlaneseq
  %v1156 = vshrl.u32 %v1155, 7
  %v1157 = vsub.s32 0, %v1156
  %v1158 = vrot.slane %v1153, %v1157
  %v1159 = vlaneseq
  %v1160 = vshrl.u32 %v1159, 7
  %v1161 = vsub.s32 1, %v1160
  %v1162 = vrot.slane %v1153, %v1161
  %v1163 = vlaneseq
  %v1164 = vshrl.u32 %v1163, 7
  %v1165 = vsub.s32 2, %v1164
  %v1166 = vrot.slane %v1153, %v1165
  %v1167 = vlaneseq
  %v1168 = vshrl.u32 %v1167, 7
  %v1169 = vsub.s32 3, %v1168
  %v1170 = vrot.slane %v1153, %v1169
  %1171 = vrot.lane.b32.xlu0 %v1158, 15
  %v1172 = vpop.permute.xlu0 %1171
  %1173 = vrot.lane.b32.xlu0 %v1162, 15
  %v1174 = vpop.permute.xlu0 %1173
  %1175 = vrot.lane.b32.xlu0 %v1166, 15
  %v1176 = vpop.permute.xlu0 %1175
  %1177 = vrot.lane.b32.xlu0 %v1170, 15
  %v1178 = vpop.permute.xlu0 %1177
  %v1179 = vsel %vm210, %v1172, %v1174
  %v1180 = vsel %vm210, %v1174, %v1176
  %v1181 = vsel %vm210, %v1176, %v1178
  %v1186 = vmul.f32 %v801, %v1172
  %v1187 = vmul.f32 %v802, %v1179
  %v1188 = vmul.f32 %v803, %v1180
  %v1189 = vmul.f32 %v804, %v1181
  %1194 = vrot.lane.b32.xlu0 %v1186, 113
  %v1195 = vpop.permute.xlu0 %1194
  %1196 = vrot.lane.b32.xlu0 %v1187, 113
  %v1197 = vpop.permute.xlu0 %1196
  %1198 = vrot.lane.b32.xlu0 %v1188, 113
  %v1199 = vpop.permute.xlu0 %1198
  %1200 = vrot.lane.b32.xlu0 %v1189, 113
  %v1201 = vpop.permute.xlu0 %1200
  %v1202 = vsel %vm191, %v1195, %v1197
  %v1203 = vsel %vm191, %v1197, %v1199
  %v1204 = vsel %vm191, %v1199, %v1201
  %1209 = vst [vmem:[#allocation2 + $0x60] sm:$0xf] %v1202
  %1210 = vst [vmem:[#allocation2 + $0x68] sm:$0xf] %v1203
  %1211 = vst [vmem:[#allocation2 + $0x70] sm:$0xf] %v1204
  %1212 = vst.msk [vmem:[#allocation2 + $0x78] sm:$0xf] %vm438, %v1201
  %1213 = vst.msk [vmem:[#allocation2 + $0x78] sm:$0xf0] %vm440, 0.0
  %v1214 = vld [vmem:[%s442] ss:$8 sm:$0xf]
  %v1216 = vlaneseq
  %v1217 = vshrl.u32 %v1216, 7
  %v1218 = vsub.s32 0, %v1217
  %v1219 = vrot.slane %v1214, %v1218
  %v1220 = vlaneseq
  %v1221 = vshrl.u32 %v1220, 7
  %v1222 = vsub.s32 1, %v1221
  %v1223 = vrot.slane %v1214, %v1222
  %v1224 = vlaneseq
  %v1225 = vshrl.u32 %v1224, 7
  %v1226 = vsub.s32 2, %v1225
  %v1227 = vrot.slane %v1214, %v1226
  %v1228 = vlaneseq
  %v1229 = vshrl.u32 %v1228, 7
  %v1230 = vsub.s32 3, %v1229
  %v1231 = vrot.slane %v1214, %v1230
  %1232 = vrot.lane.b32.xlu0 %v1219, 16
  %v1233 = vpop.permute.xlu0 %1232
  %1234 = vrot.lane.b32.xlu0 %v1223, 16
  %v1235 = vpop.permute.xlu0 %1234
  %1236 = vrot.lane.b32.xlu0 %v1227, 16
  %v1237 = vpop.permute.xlu0 %1236
  %1238 = vrot.lane.b32.xlu0 %v1231, 16
  %v1239 = vpop.permute.xlu0 %1238
  %v1240 = vsel %vm148, %v1233, %v1235
  %v1241 = vsel %vm148, %v1235, %v1237
  %v1242 = vsel %vm148, %v1237, %v1239
  %v1247 = vmul.f32 %v801, %v1233
  %v1248 = vmul.f32 %v802, %v1240
  %v1249 = vmul.f32 %v803, %v1241
  %v1250 = vmul.f32 %v804, %v1242
  %v1255 = vrot.slane %v1247, 4
  %v1256 = vrot.slane %v1248, 4
  %v1257 = vrot.slane %v1249, 4
  %v1258 = vrot.slane %v1250, 4
  %1259 = vrot.lane.b32.xlu0 %v1255, 112
  %v1260 = vpop.permute.xlu0 %1259
  %1261 = vrot.lane.b32.xlu0 %v1256, 112
  %v1262 = vpop.permute.xlu0 %1261
  %1263 = vrot.lane.b32.xlu0 %v1257, 112
  %v1264 = vpop.permute.xlu0 %1263
  %1265 = vrot.lane.b32.xlu0 %v1258, 112
  %v1266 = vpop.permute.xlu0 %1265
  %v1267 = vsel %vm129, %v1260, %v1262
  %v1268 = vsel %vm129, %v1262, %v1264
  %v1269 = vsel %vm129, %v1264, %v1266
  %1274 = vst [vmem:[#allocation2 + $0x60] sm:$0xf0] %v1267
  %1275 = vst [vmem:[#allocation2 + $0x68] sm:$0xf0] %v1268
  %1276 = vst [vmem:[#allocation2 + $0x70] sm:$0xf0] %v1269
  %1277 = vst.msk [vmem:[#allocation2 + $0x78] sm:$0xf0] %vm498, %v1266
  %1278 = vst.msk [vmem:[#allocation2 + $0x98] sm:$0xf] %vm500, 0.0
  %v1279 = vld [vmem:[%s502] ss:$8 sm:$0xf]
  %v1281 = vlaneseq
  %v1282 = vshrl.u32 %v1281, 7
  %v1283 = vsub.s32 0, %v1282
  %v1284 = vrot.slane %v1279, %v1283
  %v1285 = vlaneseq
  %v1286 = vshrl.u32 %v1285, 7
  %v1287 = vsub.s32 1, %v1286
  %v1288 = vrot.slane %v1279, %v1287
  %v1289 = vlaneseq
  %v1290 = vshrl.u32 %v1289, 7
  %v1291 = vsub.s32 2, %v1290
  %v1292 = vrot.slane %v1279, %v1291
  %v1293 = vlaneseq
  %v1294 = vshrl.u32 %v1293, 7
  %v1295 = vsub.s32 3, %v1294
  %v1296 = vrot.slane %v1279, %v1295
  %1297 = vrot.lane.b32.xlu0 %v1284, 17
  %v1298 = vpop.permute.xlu0 %1297
  %1299 = vrot.lane.b32.xlu0 %v1288, 17
  %v1300 = vpop.permute.xlu0 %1299
  %1301 = vrot.lane.b32.xlu0 %v1292, 17
  %v1302 = vpop.permute.xlu0 %1301
  %1303 = vrot.lane.b32.xlu0 %v1296, 17
  %v1304 = vpop.permute.xlu0 %1303
  %v1305 = vsel %vm86, %v1298, %v1300
  %v1306 = vsel %vm86, %v1300, %v1302
  %v1307 = vsel %vm86, %v1302, %v1304
  %v1312 = vmul.f32 %v801, %v1298
  %v1313 = vmul.f32 %v802, %v1305
  %v1314 = vmul.f32 %v803, %v1306
  %v1315 = vmul.f32 %v804, %v1307
  %1320 = vrot.lane.b32.xlu0 %v1312, 111
  %v1321 = vpop.permute.xlu0 %1320
  %1322 = vrot.lane.b32.xlu0 %v1313, 111
  %v1323 = vpop.permute.xlu0 %1322
  %1324 = vrot.lane.b32.xlu0 %v1314, 111
  %v1325 = vpop.permute.xlu0 %1324
  %1326 = vrot.lane.b32.xlu0 %v1315, 111
  %v1327 = vpop.permute.xlu0 %1326
  %v1328 = vsel %vm67, %v1321, %v1323
  %v1329 = vsel %vm67, %v1323, %v1325
  %v1330 = vsel %vm67, %v1325, %v1327
  %1335 = vst [vmem:[#allocation2 + $0x80] sm:$0xf] %v1328
  %1336 = vst [vmem:[#allocation2 + $0x88] sm:$0xf] %v1329
  %1337 = vst [vmem:[#allocation2 + $0x90] sm:$0xf] %v1330
  %1338 = vst.msk [vmem:[#allocation2 + $0x98] sm:$0xf] %vm558, %v1327
  %v1339 = vld [vmem:[%s6] sm:$0xf]
  %v1340 = vld [vmem:[#allocation2] sm:$0xff]
  %v1341 = vld [vmem:[#allocation2 + $0x8] sm:$0xff]
  %v1342 = vld [vmem:[#allocation2 + $0x10] sm:$0xff]
  %v1343 = vld [vmem:[#allocation2 + $0x18] sm:$0xff]
  %v1344 = vld [vmem:[#allocation2 + $0x20] sm:$0xff]
  %v1345 = vld [vmem:[#allocation2 + $0x28] sm:$0xff]
  %v1346 = vld [vmem:[#allocation2 + $0x30] sm:$0xff]
  %v1347 = vld [vmem:[#allocation2 + $0x38] sm:$0xff]
  %v1348 = vld [vmem:[#allocation2 + $0x40] sm:$0xff]
  %v1349 = vld [vmem:[#allocation2 + $0x48] sm:$0xff]
  %v1350 = vld [vmem:[#allocation2 + $0x50] sm:$0xff]
  %v1351 = vld [vmem:[#allocation2 + $0x58] sm:$0xff]
  %v1352 = vld [vmem:[#allocation2 + $0x60] sm:$0xff]
  %v1353 = vld [vmem:[#allocation2 + $0x68] sm:$0xff]
  %v1354 = vld [vmem:[#allocation2 + $0x70] sm:$0xff]
  %v1355 = vld [vmem:[#allocation2 + $0x78] sm:$0xff]
  %v1356 = vld [vmem:[#allocation2 + $0x80] sm:$0xf]
  %v1357 = vld [vmem:[#allocation2 + $0x88] sm:$0xf]
  %v1358 = vld [vmem:[#allocation2 + $0x90] sm:$0xf]
  %v1359 = vld [vmem:[#allocation2 + $0x98] sm:$0xf]
  %v1360 = vld [vmem:[%s7] sm:$0xf]
  %1362 = vset.pattern.permute.xlu0 0
  %1363 = vperm.xlu0 %1362, %v1360
  %v1364 = vpop.permute.xlu0 %1363
  %v1367 = vsel %vm587, %v1339, 0
  %v1370 = vsel %vm65, %v1356, 0
  %v1373 = vsel %vm65, %v1357, 0
  %v1376 = vsel %vm65, %v1358, 0
  %v1379 = vsel %vm65, %v1359, 0
  %1381 = vmatprep.subr.mxu0 %v1341
  %1382 = vmatpush1.msra.mxu0 %v1340
  %1383 = vmatprep.subr.mxu0 %v1345
  %1384 = vmatpush1.msra.mxu0 %v1344
  %1385 = vmatprep.subr.mxu0 %v1349
  %1386 = vmatpush1.msra.mxu0 %v1348
  %1387 = vmatprep.subr.mxu0 %v1353
  %1388 = vmatpush1.msra.mxu0 %v1352
  %1389 = vmatprep.subr.mxu0 %v1373
  %1390 = vmatpush1.msra.mxu0 %v1370
  %1391 = vmatprep.subr.mxu0 0.0
  %1392 = vmatpush1.msra.mxu0 0.0
  %1393 = vmatprep.subr.mxu0 0.0
  %1394 = vmatpush1.msra.mxu0 0.0
  %1395 = vmatprep.subr.mxu0 0.0
  %1396 = vmatpush1.msra.mxu0 0.0
  %1397 = vmatprep.subr.mxu0 0.0
  %1398 = vmatpush1.msra.mxu0 0.0
  %1399 = vmatprep.subr.mxu0 0.0
  %1400 = vmatpush1.msra.mxu0 0.0
  %1401 = vmatprep.subr.mxu0 0.0
  %1402 = vmatpush1.msra.mxu0 0.0
  %1403 = vmatprep.subr.mxu0 0.0
  %1404 = vmatpush1.msra.mxu0 0.0
  %1405 = vmatprep.subr.mxu0 0.0
  %1406 = vmatpush1.msra.mxu0 0.0
  %1407 = vmatprep.subr.mxu0 0.0
  %1408 = vmatpush1.msra.mxu0 0.0
  %1409 = vmatprep.subr.mxu0 0.0
  %1410 = vmatpush1.msra.mxu0 0.0
  %1411 = vmatprep.subr.mxu0 0.0
  %1412 = vmatpush1.msra.mxu0 0.0
  %1413 = vmatprep.subr.mxu0 0.0
  %1414 = vmatpush1.msra.mxu0 0.0
  %1415 = vmatprep.subr.mxu0 0.0
  %1416 = vmatpush1.msra.mxu0 0.0
  %1417 = vmatprep.subr.mxu0 0.0
  %1418 = vmatpush1.msra.mxu0 0.0
  %1419 = vmatprep.subr.mxu0 0.0
  %1420 = vmatpush1.msra.mxu0 0.0
  %1421 = vmatprep.subr.mxu0 0.0
  %1422 = vmatpush1.msra.mxu0 0.0
  %1423 = vmatprep.subr.mxu0 0.0
  %1424 = vmatpush1.msra.mxu0 0.0
  %1425 = vmatprep.subr.mxu0 0.0
  %1426 = vmatpush1.msra.mxu0 0.0
  %1427 = vmatprep.subr.mxu0 0.0
  %1428 = vmatpush1.msra.mxu0 0.0
  %1429 = vmatprep.subr.mxu0 0.0
  %1430 = vmatpush1.msra.mxu0 0.0
  %1431 = vmatprep.subr.mxu0 0.0
  %1432 = vmatpush1.msra.mxu0 0.0
  %1433 = vmatprep.subr.mxu0 0.0
  %1434 = vmatpush1.msra.mxu0 0.0
  %1435 = vmatprep.subr.mxu0 0.0
  %1436 = vmatpush1.msra.mxu0 0.0
  %1437 = vmatprep.subr.mxu0 0.0
  %1438 = vmatpush1.msra.mxu0 0.0
  %1439 = vmatprep.subr.mxu0 0.0
  %1440 = vmatpush1.msra.mxu0 0.0
  %1441 = vmatprep.subr.mxu0 0.0
  %1442 = vmatpush1.msra.mxu0 0.0
  %1443 = vmatprep.subr.mxu0 0.0
  %1444 = vmatpush1.msra.mxu0 0.0
  %1445 = vmatprep.mubr.f32.mxu0 0.0
  %1446 = vmatmul.mubr.f32.gmra.mrb[0].mxu0 %v1367
  %v1447 = vpop.f32.mrb[0].mxu0
  %v1448 = vadd.f32 %v1364, %v1447
  %v1449 = vpop.f32.mrb[0].mxu0
  %v1450 = vadd.f32 %v1364, %v1449
  %1451 = vdwg.mxu0
  %1452 = vmatprep.subr.mxu0 %v1343
  %1453 = vmatpush1.msra.mxu0 %v1342
  %1454 = vmatprep.subr.mxu0 %v1347
  %1455 = vmatpush1.msra.mxu0 %v1346
  %1456 = vmatprep.subr.mxu0 %v1351
  %1457 = vmatpush1.msra.mxu0 %v1350
  %1458 = vmatprep.subr.mxu0 %v1355
  %1459 = vmatpush1.msra.mxu0 %v1354
  %1460 = vmatprep.subr.mxu0 %v1379
  %1461 = vmatpush1.msra.mxu0 %v1376
  %1462 = vmatprep.subr.mxu0 0.0
  %1463 = vmatpush1.msra.mxu0 0.0
  %1464 = vmatprep.subr.mxu0 0.0
  %1465 = vmatpush1.msra.mxu0 0.0
  %1466 = vmatprep.subr.mxu0 0.0
  %1467 = vmatpush1.msra.mxu0 0.0
  %1468 = vmatprep.subr.mxu0 0.0
  %1469 = vmatpush1.msra.mxu0 0.0
  %1470 = vmatprep.subr.mxu0 0.0
  %1471 = vmatpush1.msra.mxu0 0.0
  %1472 = vmatprep.subr.mxu0 0.0
  %1473 = vmatpush1.msra.mxu0 0.0
  %1474 = vmatprep.subr.mxu0 0.0
  %1475 = vmatpush1.msra.mxu0 0.0
  %1476 = vmatprep.subr.mxu0 0.0
  %1477 = vmatpush1.msra.mxu0 0.0
  %1478 = vmatprep.subr.mxu0 0.0
  %1479 = vmatpush1.msra.mxu0 0.0
  %1480 = vmatprep.subr.mxu0 0.0
  %1481 = vmatpush1.msra.mxu0 0.0
  %1482 = vmatprep.subr.mxu0 0.0
  %1483 = vmatpush1.msra.mxu0 0.0
  %1484 = vmatprep.subr.mxu0 0.0
  %1485 = vmatpush1.msra.mxu0 0.0
  %1486 = vmatprep.subr.mxu0 0.0
  %1487 = vmatpush1.msra.mxu0 0.0
  %1488 = vmatprep.subr.mxu0 0.0
  %1489 = vmatpush1.msra.mxu0 0.0
  %1490 = vmatprep.subr.mxu0 0.0
  %1491 = vmatpush1.msra.mxu0 0.0
  %1492 = vmatprep.subr.mxu0 0.0
  %1493 = vmatpush1.msra.mxu0 0.0
  %1494 = vmatprep.subr.mxu0 0.0
  %1495 = vmatpush1.msra.mxu0 0.0
  %1496 = vmatprep.subr.mxu0 0.0
  %1497 = vmatpush1.msra.mxu0 0.0
  %1498 = vmatprep.subr.mxu0 0.0
  %1499 = vmatpush1.msra.mxu0 0.0
  %1500 = vmatprep.subr.mxu0 0.0
  %1501 = vmatpush1.msra.mxu0 0.0
  %1502 = vmatprep.subr.mxu0 0.0
  %1503 = vmatpush1.msra.mxu0 0.0
  %1504 = vmatprep.subr.mxu0 0.0
  %1505 = vmatpush1.msra.mxu0 0.0
  %1506 = vmatprep.subr.mxu0 0.0
  %1507 = vmatpush1.msra.mxu0 0.0
  %1508 = vmatprep.subr.mxu0 0.0
  %1509 = vmatpush1.msra.mxu0 0.0
  %1510 = vmatprep.subr.mxu0 0.0
  %1511 = vmatpush1.msra.mxu0 0.0
  %1512 = vmatprep.subr.mxu0 0.0
  %1513 = vmatpush1.msra.mxu0 0.0
  %1514 = vmatprep.subr.mxu0 0.0
  %1515 = vmatpush1.msra.mxu0 0.0
  %1516 = vmatprep.mubr.f32.mxu0 0.0
  %1517 = vmatmul.mubr.f32.gmra.mrb[0].mxu0 %v1367
  %v1518 = vpop.f32.mrb[0].mxu0
  %v1519 = vadd.f32 %v1364, %v1518
  %v1520 = vpop.f32.mrb[0].mxu0
  %v1521 = vadd.f32 %v1364, %v1520
  %1522 = vdwg.mxu0
  %v1523 = vsel %vm65, %v1448, 0.0
  %v1524 = vsel %vm65, %v1450, 0.0
  %v1525 = vadd.f32 %v1523, %v1524
  %v1526 = vsel %vm65, %v1519, 0.0
  %v1527 = vadd.f32 %v1525, %v1526
  %v1528 = vsel %vm65, %v1521, 0.0
  %v1529 = vadd.f32 %v1527, %v1528
  %1530 = vadd.xlane.f32.xlu0 %v1529
  %v1531 = vpop.xlane.xlu0 %1530
  %v1532 = vmul.f32 %v1531, 0.001953125
  %v1533 = vmul.f32 %v1448, %v1448
  %v1534 = vmul.f32 %v1450, %v1450
  %v1535 = vmul.f32 %v1519, %v1519
  %v1536 = vmul.f32 %v1521, %v1521
  %v1537 = vsel %vm65, %v1533, 0.0
  %v1538 = vsel %vm65, %v1534, 0.0
  %v1539 = vadd.f32 %v1537, %v1538
  %v1540 = vsel %vm65, %v1535, 0.0
  %v1541 = vadd.f32 %v1539, %v1540
  %v1542 = vsel %vm65, %v1536, 0.0
  %v1543 = vadd.f32 %v1541, %v1542
  %1544 = vadd.xlane.f32.xlu0 %v1543
  %v1545 = vpop.xlane.xlu0 %1544
  %v1546 = vmul.f32 %v1545, 0.001953125
  %v1547 = vmul.f32 %v1532, %v1532
  %v1548 = vsub.f32 %v1546, %v1547
  %v1549 = vsub.f32 %v1448, %v1532
  %v1550 = vsub.f32 %v1450, %v1532
  %v1551 = vsub.f32 %v1519, %v1532
  %v1552 = vsub.f32 %v1521, %v1532
  %v1553 = vadd.f32 %v1548, 1e-05
  %v1554 = vrsqrt.pop %v1553
  %v1555 = vmul.f32 %v1549, %v1554
  %v1556 = vmul.f32 %v1550, %v1554
  %v1557 = vmul.f32 %v1551, %v1554
  %v1558 = vmul.f32 %v1552, %v1554
  %v1559 = vld [vmem:[%s8] sm:$0xf]
  %1561 = vset.pattern.permute.xlu0 0
  %1562 = vperm.xlu0 %1561, %v1559
  %v1563 = vpop.permute.xlu0 %1562
  %v1565 = vmul.f32 %v1555, %v1563
  %v1566 = vmul.f32 %v1556, %v1563
  %v1567 = vmul.f32 %v1557, %v1563
  %v1568 = vmul.f32 %v1558, %v1563
  %v1569 = vld [vmem:[%s9] sm:$0xf]
  %1571 = vset.pattern.permute.xlu0 0
  %1572 = vperm.xlu0 %1571, %v1569
  %v1573 = vpop.permute.xlu0 %1572
  %v1575 = vadd.f32 %v1565, %v1573
  %v1576 = vadd.f32 %v1566, %v1573
  %v1577 = vadd.f32 %v1567, %v1573
  %v1578 = vadd.f32 %v1568, %v1573
  %v1581 = vcombine.high %v35, %v35
  %v1582 = vcombine.high %v36, %v36
  %v1585 = vadd.f32 %v1575, %v35
  %v1586 = vadd.f32 %v1576, %v1581
  %v1587 = vadd.f32 %v1577, %v36
  %v1588 = vadd.f32 %v1578, %v1582
  %v1589 = vmax.f32 %v1585, 0.0
  %v1590 = vmax.f32 %v1586, 0.0
  %v1591 = vmax.f32 %v1587, 0.0
  %v1592 = vmax.f32 %v1588, 0.0
  %v1597 = vcombine.low %v1589, %v1590
  %v1598 = vcombine.low %v1591, %v1592
  %1601 = vst [vmem:[%s10] sm:$0xff] %v1597
  %1602 = vst [vmem:[%s10 + $0x8] sm:$0xff] %v1598
  // Predicated region
  $region42: #{residual_forward.1} parent=0 // pred_check
    _
  $region43: #{residual_forward.1} parent=0 // pred_check_branch
    %1604 = sbr.rel (0) target = $region45
  $region44: #{residual_forward.1} parent=0 // pred_region
    _
  $region45: #{residual_forward.1} parent=0 // pred_fallthru
    _
  // Predicated region
  $region46: #{residual_forward.1} parent=0 // pred_check
    _
  $region47: #{residual_forward.1} parent=0 // pred_check_branch
    %1606 = sbr.rel (0) target = $region49
  $region48: #{residual_forward.1} parent=0 // pred_region
    _
  $region49: #{residual_forward.1} parent=0 // pred_fallthru
    _

</llo_original>
